<compile_context>
chip_gen: v7x
topology: tpu7x:2x2x1
jax: 0.10.0
libtpu: 0.0.40
codegen_flags: <defaults>
</compile_context>

<pallas_src>
import jax
import jax.numpy as jnp
from jax.experimental import pallas as pl
from jax.experimental.pallas import tpu as pltpu


def dwconv2d_kernel(x_ref, wd_ref, wp_ref, o_ref, acc_ref):
    """One (batch, channel-tile) grid step.

    x_ref  : (1, H+2, W+2, TC)  spatially pre-padded input slab (channels-last)
    wd_ref : (3, 3, TC)         depthwise 3x3 weights (channels-last)
    wp_ref : (TC, Cout)         pointwise 1x1 weights
    o_ref  : (1, H, W, Cout)    output block (resident across channel tiles)
    acc_ref: VMEM (H*W, Cout) f32 accumulator
    """
    c_idx = pl.program_id(1)

    @pl.when(c_idx == 0)
    def _():
        acc_ref[...] = jnp.zeros_like(acc_ref)

    H = o_ref.shape[1]
    W = o_ref.shape[2]

    xp = x_ref[0]          # (H+2, W+2, TC)
    wd = wd_ref[...]       # (3, 3, TC)

    # Depthwise 3x3, stride 1 ("same": halo already zero-padded by the wrapper).
    # Per-channel weight broadcasts along the lane (channel) dim -> pure VPU.
    dw = None
    for i in range(3):
        for j in range(3):
            term = xp[i:i + H, j:j + W, :] * wd[i, j, :]
            dw = term if dw is None else dw + term            # (H, W, TC)

    # Pointwise 1x1 == per-pixel matmul on the MXU; accumulate over channel tiles.
    acc_ref[...] += jnp.dot(dw.reshape(H * W, dw.shape[-1]), wp_ref[...],
                            preferred_element_type=jnp.float32)

    @pl.when(c_idx == pl.num_programs(1) - 1)
    def _():
        o_ref[0] = acc_ref[...].reshape(H, W, acc_ref.shape[-1]).astype(o_ref.dtype)


def dwconv2d(x_nchw, wd, wp):
    """Fused depthwise(3x3, pad=1, groups=C) + pointwise(1x1), both bias=False.

    x_nchw : (B, C, H, W) f32
    wd     : (3, 3, C)    depthwise weights  (torch depthwise.weight[c, 0, kh, kw] -> wd[kh, kw, c])
    wp     : (C, Cout)    pointwise weights  (torch pointwise.weight[co, c, 0, 0] -> wp[c, co])
    returns  (B, Cout, H, W) f32
    """
    B, C, H, W = x_nchw.shape
    Cout = wp.shape[1]

    # NCHW -> NHWC + zero-pad the 3x3 halo (single XLA pass; in an all-Pallas
    # NHWC pipeline these layout conversions would disappear entirely).
    x_nhwc = jnp.transpose(x_nchw, (0, 2, 3, 1))
    x_pad = jnp.pad(x_nhwc, ((0, 0), (1, 1), (1, 1), (0, 0)))
    Hp, Wp = H + 2, W + 2

    # Channel-tile size for the reduction axis.  The last block dim must be a
    # multiple of 128 or the full C (TPU (8,128) block rule).
    if C > 128 and C % 128 == 0:
        TC = 128
    else:
        TC = C
    nC = C // TC

    out_nhwc = pl.pallas_call(
        dwconv2d_kernel,
        out_shape=jax.ShapeDtypeStruct((B, H, W, Cout), jnp.float32),
        grid_spec=pltpu.PrefetchScalarGridSpec(
            num_scalar_prefetch=0,
            grid=(B, nC),                                            # reduction axis last
            in_specs=[
                pl.BlockSpec((1, Hp, Wp, TC), lambda b, c: (b, 0, 0, c)),   # x (padded)
                pl.BlockSpec((3, 3, TC),      lambda b, c: (0, 0, c)),      # depthwise w
                pl.BlockSpec((TC, Cout),      lambda b, c: (c, 0)),         # pointwise w
            ],
            out_specs=pl.BlockSpec((1, H, W, Cout), lambda b, c: (b, 0, 0, 0)),
            scratch_shapes=[pltpu.VMEM((H * W, Cout), jnp.float32)],
        ),
        compiler_params=pltpu.CompilerParams(
            dimension_semantics=("parallel", "arbitrary"),
            vmem_limit_bytes=48 * 1024 * 1024,
        ),
    )(x_pad, wd, wp)

    return jnp.transpose(out_nhwc, (0, 3, 1, 2))                     # NHWC -> NCHW


def dwconv2d_reference(x_nchw, wd, wp):
    """Plain-JAX reference matching the PyTorch forward."""
    C = x_nchw.shape[1]
    dw_oihw = jnp.transpose(wd, (2, 0, 1))[:, None, :, :]            # (C, 1, 3, 3)
    y = jax.lax.conv_general_dilated(
        x_nchw, dw_oihw, window_strides=(1, 1), padding=((1, 1), (1, 1)),
        dimension_numbers=("NCHW", "OIHW", "NCHW"), feature_group_count=C)
    pw_oihw = jnp.transpose(wp, (1, 0))[:, :, None, None]            # (Cout, C, 1, 1)
    y = jax.lax.conv_general_dilated(
        y, pw_oihw, window_strides=(1, 1), padding=((0, 0), (0, 0)),
        dimension_numbers=("NCHW", "OIHW", "NCHW"))
    return y


def _run_case(key, B, C, Cout, H, W):
    kx, kd, kp = jax.random.split(key, 3)
    x = jax.random.normal(kx, (B, C, H, W), dtype=jnp.float32)
    # Deterministic synthetic weights (kaiming-uniform-like scaling).
    wd = jax.random.uniform(kd, (3, 3, C), jnp.float32, -1.0, 1.0) / 3.0
    wp = jax.random.uniform(kp, (C, Cout), jnp.float32, -1.0, 1.0) / (C ** 0.5)

    out = jax.block_until_ready(dwconv2d(x, wd, wp))
    ref = dwconv2d_reference(x, wd, wp)
    assert out.shape == (B, Cout, H, W)
    err = float(jnp.max(jnp.abs(out - ref)))
    assert jnp.allclose(out, ref, atol=1e-4, rtol=1e-4), f"mismatch vs reference: {err}"


if __name__ == "__main__":
    key = jax.random.PRNGKey(0)
    k1, k2 = jax.random.split(key)
    # Small shapes consistent with the module: DWConv2d(32 -> 64) on a 16x16 map.
    _run_case(k1, B=2, C=32, Cout=64, H=16, W=16)
    # Exercises the channel-tiled reduction/accumulator path (C=256 -> 2 tiles of 128).
    _run_case(k2, B=1, C=256, Cout=32, H=8, W=8)
    print("KERNEL_OK")
</pallas_src>

<mosaic_0001>
module attributes {stable_mosaic.version = 11 : i64} {
  func.func @dwconv2d_kernel(%arg0: i32, %arg1: i32, %arg2: memref<1x18x18x32xf32, #tpu.memory_space<vmem>>, %arg3: memref<3x3x32xf32, #tpu.memory_space<vmem>>, %arg4: memref<32x64xf32, #tpu.memory_space<vmem>>, %arg5: memref<1x16x16x64xf32, #tpu.memory_space<vmem>>, %arg6: memref<256x64xf32, #tpu.memory_space<vmem>>) attributes {dimension_semantics = [#tpu.dimension_semantics<parallel>, #tpu.dimension_semantics<arbitrary>], iteration_bounds = array<i64: 2, 1>, scalar_prefetch = 0 : i64, scratch_operands = 1 : i64, tpu.core_type = #tpu.core_type<tc>, window_params = [{transform_indices = @transform_0, window_bounds = array<i64: 1, 18, 18, 32>}, {transform_indices = @transform_1, window_bounds = array<i64: 3, 3, 32>}, {transform_indices = @transform_2, window_bounds = array<i64: 32, 64>}, {transform_indices = @transform_3, window_bounds = array<i64: 1, 16, 16, 64>}]} {
    %c0_i32 = arith.constant 0 : i32
    %0 = arith.cmpi eq, %arg1, %c0_i32 : i32
    %1 = arith.extui %0 : i1 to i32
    %c0_i32_0 = arith.constant 0 : i32
    %2 = arith.cmpi ne, %1, %c0_i32_0 : i32
    scf.if %2 {
      %cst_15 = arith.constant 0.000000e+00 : f32
      %77 = vector.broadcast %cst_15 : f32 to vector<256x64xf32>
      %c0_16 = arith.constant 0 : index
      %c0_17 = arith.constant 0 : index
      %78 = vector.load %arg6[%c0_16, %c0_17] : memref<256x64xf32, #tpu.memory_space<vmem>>, vector<256x64xf32>
      tpu.vector_store %arg6[%c0_16, %c0_17], %77 {strides = array<i32>} : memref<256x64xf32, #tpu.memory_space<vmem>>, vector<256x64xf32>,
    } else {
    }
    %c0 = arith.constant 0 : index
    %c0_1 = arith.constant 0 : index
    %c0_2 = arith.constant 0 : index
    %c0_3 = arith.constant 0 : index
    %3 = vector.load %arg2[%c0, %c0_1, %c0_2, %c0_3] : memref<1x18x18x32xf32, #tpu.memory_space<vmem>>, vector<1x18x18x32xf32>
    %4 = vector.shape_cast %3 : vector<1x18x18x32xf32> to vector<18x18x32xf32>
    %c0_4 = arith.constant 0 : index
    %c0_5 = arith.constant 0 : index
    %c0_6 = arith.constant 0 : index
    %5 = vector.load %arg3[%c0_4, %c0_5, %c0_6] : memref<3x3x32xf32, #tpu.memory_space<vmem>>, vector<3x3x32xf32>
    %6 = vector.extract_strided_slice %4 {offsets = [0, 0, 0], sizes = [16, 16, 32], strides = [1, 1, 1]} : vector<18x18x32xf32> to vector<16x16x32xf32>
    %7 = vector.extract_strided_slice %5 {offsets = [0, 0, 0], sizes = [1, 1, 32], strides = [1, 1, 1]} : vector<3x3x32xf32> to vector<1x1x32xf32>
    %8 = vector.shape_cast %7 : vector<1x1x32xf32> to vector<32xf32>
    %9 = vector.shape_cast %8 : vector<32xf32> to vector<1x1x32xf32>
    %10 = vector.broadcast %9 : vector<1x1x32xf32> to vector<16x16x32xf32>
    %11 = arith.mulf %6, %10 : vector<16x16x32xf32>
    %12 = vector.extract_strided_slice %4 {offsets = [0, 1, 0], sizes = [16, 16, 32], strides = [1, 1, 1]} : vector<18x18x32xf32> to vector<16x16x32xf32>
    %13 = vector.extract_strided_slice %5 {offsets = [0, 1, 0], sizes = [1, 1, 32], strides = [1, 1, 1]} : vector<3x3x32xf32> to vector<1x1x32xf32>
    %14 = vector.shape_cast %13 : vector<1x1x32xf32> to vector<32xf32>
    %15 = vector.shape_cast %14 : vector<32xf32> to vector<1x1x32xf32>
    %16 = vector.broadcast %15 : vector<1x1x32xf32> to vector<16x16x32xf32>
    %17 = arith.mulf %12, %16 : vector<16x16x32xf32>
    %18 = arith.addf %11, %17 : vector<16x16x32xf32>
    %19 = vector.extract_strided_slice %4 {offsets = [0, 2, 0], sizes = [16, 16, 32], strides = [1, 1, 1]} : vector<18x18x32xf32> to vector<16x16x32xf32>
    %20 = vector.extract_strided_slice %5 {offsets = [0, 2, 0], sizes = [1, 1, 32], strides = [1, 1, 1]} : vector<3x3x32xf32> to vector<1x1x32xf32>
    %21 = vector.shape_cast %20 : vector<1x1x32xf32> to vector<32xf32>
    %22 = vector.shape_cast %21 : vector<32xf32> to vector<1x1x32xf32>
    %23 = vector.broadcast %22 : vector<1x1x32xf32> to vector<16x16x32xf32>
    %24 = arith.mulf %19, %23 : vector<16x16x32xf32>
    %25 = arith.addf %18, %24 : vector<16x16x32xf32>
    %26 = vector.extract_strided_slice %4 {offsets = [1, 0, 0], sizes = [16, 16, 32], strides = [1, 1, 1]} : vector<18x18x32xf32> to vector<16x16x32xf32>
    %27 = vector.extract_strided_slice %5 {offsets = [1, 0, 0], sizes = [1, 1, 32], strides = [1, 1, 1]} : vector<3x3x32xf32> to vector<1x1x32xf32>
    %28 = vector.shape_cast %27 : vector<1x1x32xf32> to vector<32xf32>
    %29 = vector.shape_cast %28 : vector<32xf32> to vector<1x1x32xf32>
    %30 = vector.broadcast %29 : vector<1x1x32xf32> to vector<16x16x32xf32>
    %31 = arith.mulf %26, %30 : vector<16x16x32xf32>
    %32 = arith.addf %25, %31 : vector<16x16x32xf32>
    %33 = vector.extract_strided_slice %4 {offsets = [1, 1, 0], sizes = [16, 16, 32], strides = [1, 1, 1]} : vector<18x18x32xf32> to vector<16x16x32xf32>
    %34 = vector.extract_strided_slice %5 {offsets = [1, 1, 0], sizes = [1, 1, 32], strides = [1, 1, 1]} : vector<3x3x32xf32> to vector<1x1x32xf32>
    %35 = vector.shape_cast %34 : vector<1x1x32xf32> to vector<32xf32>
    %36 = vector.shape_cast %35 : vector<32xf32> to vector<1x1x32xf32>
    %37 = vector.broadcast %36 : vector<1x1x32xf32> to vector<16x16x32xf32>
    %38 = arith.mulf %33, %37 : vector<16x16x32xf32>
    %39 = arith.addf %32, %38 : vector<16x16x32xf32>
    %40 = vector.extract_strided_slice %4 {offsets = [1, 2, 0], sizes = [16, 16, 32], strides = [1, 1, 1]} : vector<18x18x32xf32> to vector<16x16x32xf32>
    %41 = vector.extract_strided_slice %5 {offsets = [1, 2, 0], sizes = [1, 1, 32], strides = [1, 1, 1]} : vector<3x3x32xf32> to vector<1x1x32xf32>
    %42 = vector.shape_cast %41 : vector<1x1x32xf32> to vector<32xf32>
    %43 = vector.shape_cast %42 : vector<32xf32> to vector<1x1x32xf32>
    %44 = vector.broadcast %43 : vector<1x1x32xf32> to vector<16x16x32xf32>
    %45 = arith.mulf %40, %44 : vector<16x16x32xf32>
    %46 = arith.addf %39, %45 : vector<16x16x32xf32>
    %47 = vector.extract_strided_slice %4 {offsets = [2, 0, 0], sizes = [16, 16, 32], strides = [1, 1, 1]} : vector<18x18x32xf32> to vector<16x16x32xf32>
    %48 = vector.extract_strided_slice %5 {offsets = [2, 0, 0], sizes = [1, 1, 32], strides = [1, 1, 1]} : vector<3x3x32xf32> to vector<1x1x32xf32>
    %49 = vector.shape_cast %48 : vector<1x1x32xf32> to vector<32xf32>
    %50 = vector.shape_cast %49 : vector<32xf32> to vector<1x1x32xf32>
    %51 = vector.broadcast %50 : vector<1x1x32xf32> to vector<16x16x32xf32>
    %52 = arith.mulf %47, %51 : vector<16x16x32xf32>
    %53 = arith.addf %46, %52 : vector<16x16x32xf32>
    %54 = vector.extract_strided_slice %4 {offsets = [2, 1, 0], sizes = [16, 16, 32], strides = [1, 1, 1]} : vector<18x18x32xf32> to vector<16x16x32xf32>
    %55 = vector.extract_strided_slice %5 {offsets = [2, 1, 0], sizes = [1, 1, 32], strides = [1, 1, 1]} : vector<3x3x32xf32> to vector<1x1x32xf32>
    %56 = vector.shape_cast %55 : vector<1x1x32xf32> to vector<32xf32>
    %57 = vector.shape_cast %56 : vector<32xf32> to vector<1x1x32xf32>
    %58 = vector.broadcast %57 : vector<1x1x32xf32> to vector<16x16x32xf32>
    %59 = arith.mulf %54, %58 : vector<16x16x32xf32>
    %60 = arith.addf %53, %59 : vector<16x16x32xf32>
    %61 = vector.extract_strided_slice %4 {offsets = [2, 2, 0], sizes = [16, 16, 32], strides = [1, 1, 1]} : vector<18x18x32xf32> to vector<16x16x32xf32>
    %62 = vector.extract_strided_slice %5 {offsets = [2, 2, 0], sizes = [1, 1, 32], strides = [1, 1, 1]} : vector<3x3x32xf32> to vector<1x1x32xf32>
    %63 = vector.shape_cast %62 : vector<1x1x32xf32> to vector<32xf32>
    %64 = vector.shape_cast %63 : vector<32xf32> to vector<1x1x32xf32>
    %65 = vector.broadcast %64 : vector<1x1x32xf32> to vector<16x16x32xf32>
    %66 = arith.mulf %61, %65 : vector<16x16x32xf32>
    %67 = arith.addf %60, %66 : vector<16x16x32xf32>
    %c0_7 = arith.constant 0 : index
    %c0_8 = arith.constant 0 : index
    %68 = vector.load %arg6[%c0_7, %c0_8] : memref<256x64xf32, #tpu.memory_space<vmem>>, vector<256x64xf32>
    %69 = vector.shape_cast %67 : vector<16x16x32xf32> to vector<256x32xf32>
    %c0_9 = arith.constant 0 : index
    %c0_10 = arith.constant 0 : index
    %70 = vector.load %arg4[%c0_9, %c0_10] : memref<32x64xf32, #tpu.memory_space<vmem>>, vector<32x64xf32>
    %cst = arith.constant dense<0.000000e+00> : vector<256x64xf32>
    %71 = tpu.matmul %69, %70, %cst {dimension_numbers = #tpu.dot_dimension_numbers<[1], [0], [0], [1], [0, 0, 1, 1], [], []>} : vector<256x32xf32>, vector<32x64xf32>, vector<256x64xf32> -> vector<256x64xf32>
    %72 = arith.addf %68, %71 : vector<256x64xf32>
    %c0_11 = arith.constant 0 : index
    %c0_12 = arith.constant 0 : index
    %73 = vector.load %arg6[%c0_11, %c0_12] : memref<256x64xf32, #tpu.memory_space<vmem>>, vector<256x64xf32>
    tpu.vector_store %arg6[%c0_11, %c0_12], %72 {strides = array<i32>} : memref<256x64xf32, #tpu.memory_space<vmem>>, vector<256x64xf32>,
    %c0_i32_13 = arith.constant 0 : i32
    %74 = arith.cmpi eq, %arg1, %c0_i32_13 : i32
    %75 = arith.extui %74 : i1 to i32
    %c0_i32_14 = arith.constant 0 : i32
    %76 = arith.cmpi ne, %75, %c0_i32_14 : i32
    scf.if %76 {
      %c0_15 = arith.constant 0 : index
      %c0_16 = arith.constant 0 : index
      %77 = vector.load %arg6[%c0_15, %c0_16] : memref<256x64xf32, #tpu.memory_space<vmem>>, vector<256x64xf32>
      %78 = vector.shape_cast %77 : vector<256x64xf32> to vector<16x16x64xf32>
      %c0_17 = arith.constant 0 : index
      %c0_18 = arith.constant 0 : index
      %c0_19 = arith.constant 0 : index
      %c0_20 = arith.constant 0 : index
      %79 = vector.load %arg5[%c0_17, %c0_18, %c0_19, %c0_20] : memref<1x16x16x64xf32, #tpu.memory_space<vmem>>, vector<1x16x16x64xf32>
      %80 = vector.shape_cast %79 : vector<1x16x16x64xf32> to vector<16x16x64xf32>
      %81 = vector.shape_cast %78 : vector<16x16x64xf32> to vector<1x16x16x64xf32>
      tpu.vector_store %arg5[%c0_17, %c0_18, %c0_19, %c0_20], %81 {strides = array<i32>} : memref<1x16x16x64xf32, #tpu.memory_space<vmem>>, vector<1x16x16x64xf32>,
    } else {
    }
    return
  }
  func.func @transform_0(%arg0: i32, %arg1: i32) -> (i32, i32, i32, i32) {
    %c0_i32 = arith.constant 0 : i32
    %c0_i32_0 = arith.constant 0 : i32
    %c0_i32_1 = arith.constant 0 : i32
    return %arg0, %c0_i32, %c0_i32_0, %arg1 : i32, i32, i32, i32
  }
  func.func @transform_1(%arg0: i32, %arg1: i32) -> (i32, i32, i32) {
    %c0_i32 = arith.constant 0 : i32
    %c0_i32_0 = arith.constant 0 : i32
    %c0_i32_1 = arith.constant 0 : i32
    return %c0_i32, %c0_i32_0, %arg1 : i32, i32, i32
  }
  func.func @transform_2(%arg0: i32, %arg1: i32) -> (i32, i32) {
    %c0_i32 = arith.constant 0 : i32
    %c0_i32_0 = arith.constant 0 : i32
    return %arg1, %c0_i32 : i32, i32
  }
  func.func @transform_3(%arg0: i32, %arg1: i32) -> (i32, i32, i32, i32) {
    %c0_i32 = arith.constant 0 : i32
    %c0_i32_0 = arith.constant 0 : i32
    %c0_i32_1 = arith.constant 0 : i32
    %c0_i32_2 = arith.constant 0 : i32
    return %arg0, %c0_i32, %c0_i32_0, %c0_i32_1 : i32, i32, i32, i32
  }
}

</mosaic_0001>

<llo_original>
// kernel: tpu_custom_call.1
$region0: #{tpu_custom_call.1}
  #allocation0 [shape = 'u32[]', space=smem, size = 0x4, offset = 0x4, fixed_abs, tag = 'smem constant byte address 0x4 - core index']
  #allocation1 [shape = 'u32[144,128]{1,0:T(1,128)}', space=vmem, size = 0x12000, scoped, tag = 'internal scratch']
  #allocation2 [shape = 'f32[256,64]{1,0:T(8,128)}', space=vmem, size = 0x20000, scoped, tag = 'scratch operand']
  %s0 = inlined_call_operand.vmem [shape: f32[2,18,18,32], index: 0, kind: input, shape index: {}]
  %s1 = inlined_call_operand.vmem [shape: f32[3,3,32], index: 1, kind: input, shape index: {}]
  %s2 = inlined_call_operand.vmem [shape: f32[32,64], index: 2, kind: input, shape index: {}]
  %s3 = inlined_call_operand.hbm [shape: f32[2,16,16,64], index: 3, kind: output, shape index: {}]
  %s4 = sld [smem:[#allocation0]]
  $region53: #{tpu_custom_call.1} parent=0
    _
  %s6 = ssub.s32 1, %s4
  %s7 = scalar_select 0, %s6, %s4
  $region1: #{tpu_custom_call.1} parent=0
    #allocation3 [shape = 'u8[262144]{0}', space=vmem, size = 0x40000, scoped, tag = 'output window, operand 0']
    #allocation4 [shape = 's32[2]{0}', space=sflag, size = 0x8, scoped, tag = 'scoped memory for tpu_custom_call.1']
    %8 = vsyncpa [#allocation4], 0
    %s9 = scalar_lea.sflag [#allocation4], 1
    %10 = vsyncpa %s9, 0
    loop: start=0, step=1, limit=4
    $region2: #{tpu_custom_call.1} parent=1 // loop_pre_header
      _
    $region3: #{tpu_custom_call.1} parent=1 // loop_header
      %s12 = sphi 0, %s16
      %p13 = scmp.ge.s32.totalorder %s12, 4
      %s19 = sphi 0, %s31
      %s20 = sphi 0, %s27
      %s21 = sphi 0, %s19
      %s22 = sphi 0, %s20
      %s23 = sphi 0, %s21
      %s24 = sphi 0, %s22
      %s36 = sphi 0, %s38
      %s39 = sphi 0, %s36
      %s40 = sphi 0, %s39
      %s56 = sphi 0, %s40
      %s62 = sphi 0, %s64
      %s65 = sphi 0, %s62
      %s66 = sphi 0, %s65
      %s82 = sphi 0, %s66
      %s88 = sphi 0, %s90
      %s91 = sphi 0, %s88
      %s92 = sphi 0, %s91
      %s108 = sphi 0, %s92
      %s114 = sphi 0, %s116
      %s117 = sphi 0, %s114
      %s118 = sphi 0, %s117
      %s134 = sphi 0, %s118
    $region4: #{tpu_custom_call.1} parent=1 // loop_header_branch
      %15 = sbr.rel (%p13) target = $region8
    $region5: #{tpu_custom_call.1} parent=1 // loop_body
      %s17 = ssub.s32 %s12, 1
      %s18 = ssub.s32 %s12, 2
      %s25 = sadd.s32 1, %s20
      %p26 = scmp.ge.s32.totalorder %s25, 1
      %s27 = scalar_select %p26, 0, %s25
      %s28 = sadd.s32 1, %s19
      %s29 = scalar_select %p26, %s28, %s19
      %p30 = scmp.ge.s32.totalorder %s29, 2
      %s31 = scalar_select %p30, 0, %s29
      %s32 = ssub.s32 %s19, %s31
      %s33 = ssub.s32 %s20, %s27
      %s34 = sor.u32 %s32, %s33
      %p35 = scmp.eq.s32.totalorder %s34, 0
      %s37 = sadd.s32 %s36, 1
      %s38 = scalar_select %p35, %s36, %s37
      %p41 = pneg %p35
      %p42 = scmp.eq.s32.totalorder %s12, 1
      %p43 = por %p41, %p42
      %p44 = scmp.ne.s32.totalorder %s36, %s39
      %p45 = scmp.eq.s32.totalorder %s12, 0
      %p46 = por %p44, %p45
      %p47 = scmp.ne.s32.totalorder %s36, %s39
      %p48 = scmp.eq.s32.totalorder %s17, 1
      %p49 = por %p47, %p48
      %p50 = scmp.ne.s32.totalorder %s39, %s40
      %p51 = scmp.eq.s32.totalorder %s17, 0
      %p52 = por %p50, %p51
      %p53 = scmp.ne.s32.totalorder %s39, %s40
      %p54 = scmp.eq.s32.totalorder %s18, 1
      %p55 = por %p53, %p54
      %p57 = scmp.ne.s32.totalorder %s40, %s56
      %p58 = scmp.eq.s32.totalorder %s18, 0
      %p59 = por %p57, %p58
      %s60 = ssub.s32 %s20, %s27
      %p61 = scmp.eq.s32.totalorder %s60, 0
      %s63 = sadd.s32 %s62, 1
      %s64 = scalar_select %p61, %s62, %s63
      %p67 = pneg %p61
      %p68 = scmp.eq.s32.totalorder %s12, 1
      %p69 = por %p67, %p68
      %p70 = scmp.ne.s32.totalorder %s62, %s65
      %p71 = scmp.eq.s32.totalorder %s12, 0
      %p72 = por %p70, %p71
      %p73 = scmp.ne.s32.totalorder %s62, %s65
      %p74 = scmp.eq.s32.totalorder %s17, 1
      %p75 = por %p73, %p74
      %p76 = scmp.ne.s32.totalorder %s65, %s66
      %p77 = scmp.eq.s32.totalorder %s17, 0
      %p78 = por %p76, %p77
      %p79 = scmp.ne.s32.totalorder %s65, %s66
      %p80 = scmp.eq.s32.totalorder %s18, 1
      %p81 = por %p79, %p80
      %p83 = scmp.ne.s32.totalorder %s66, %s82
      %p84 = scmp.eq.s32.totalorder %s18, 0
      %p85 = por %p83, %p84
      %s86 = ssub.s32 %s20, %s27
      %p87 = scmp.eq.s32.totalorder %s86, 0
      %s89 = sadd.s32 %s88, 1
      %s90 = scalar_select %p87, %s88, %s89
      %p93 = pneg %p87
      %p94 = scmp.eq.s32.totalorder %s12, 1
      %p95 = por %p93, %p94
      %p96 = scmp.ne.s32.totalorder %s88, %s91
      %p97 = scmp.eq.s32.totalorder %s12, 0
      %p98 = por %p96, %p97
      %p99 = scmp.ne.s32.totalorder %s88, %s91
      %p100 = scmp.eq.s32.totalorder %s17, 1
      %p101 = por %p99, %p100
      %p102 = scmp.ne.s32.totalorder %s91, %s92
      %p103 = scmp.eq.s32.totalorder %s17, 0
      %p104 = por %p102, %p103
      %p105 = scmp.ne.s32.totalorder %s91, %s92
      %p106 = scmp.eq.s32.totalorder %s18, 1
      %p107 = por %p105, %p106
      %p109 = scmp.ne.s32.totalorder %s92, %s108
      %p110 = scmp.eq.s32.totalorder %s18, 0
      %p111 = por %p109, %p110
      %s112 = ssub.s32 %s19, %s31
      %p113 = scmp.eq.s32.totalorder %s112, 0
      %s115 = sadd.s32 %s114, 1
      %s116 = scalar_select %p113, %s114, %s115
      %p119 = pneg %p113
      %p120 = scmp.eq.s32.totalorder %s12, 1
      %p121 = por %p119, %p120
      %p122 = scmp.ne.s32.totalorder %s114, %s117
      %p123 = scmp.eq.s32.totalorder %s12, 0
      %p124 = por %p122, %p123
      %p125 = scmp.ne.s32.totalorder %s114, %s117
      %p126 = scmp.eq.s32.totalorder %s17, 1
      %p127 = por %p125, %p126
      %p128 = scmp.ne.s32.totalorder %s117, %s118
      %p129 = scmp.eq.s32.totalorder %s17, 0
      %p130 = por %p128, %p129
      %p131 = scmp.ne.s32.totalorder %s117, %s118
      %p132 = scmp.eq.s32.totalorder %s18, 1
      %p133 = por %p131, %p132
      %p135 = scmp.ne.s32.totalorder %s118, %s134
      %p136 = scmp.eq.s32.totalorder %s18, 0
      %p137 = por %p135, %p136
      %p138 = scmp.le.s32.totalorder 1, %s12
      %p139 = scmp.lt.s32.totalorder %s12, 3
      %p140 = pnand %p138, %p139
      %p141 = pneg %p140
      // Predicated region
      $region9: #{tpu_custom_call.1} parent=5 // pred_check
        _
      $region10: #{tpu_custom_call.1} parent=5 // pred_check_branch
        %143 = sbr.rel (%p140) target = $region12
      $region11: #{tpu_custom_call.1} parent=5 // pred_region
        %s144 = ssub.s32 %s12, 1
        // Predicated region
        $region13: #{tpu_custom_call.1} parent=11 // pred_check
          %p145 = pneg %p78
        $region14: #{tpu_custom_call.1} parent=11 // pred_check_branch
          %147 = sbr.rel (%p145) target = $region16
        $region15: #{tpu_custom_call.1} parent=11 // pred_region
          %p148 = scmp.lt.s32.totalorder %s22, 0
          %s149 = scalar_select %p148, %s22, 0
          %s150 = smul.addr %s149, 4
          %s151 = scalar_lea.vmem %s1, %s150
        $region16: #{tpu_custom_call.1} parent=11 // pred_fallthru
          _
        // Predicated region
        $region17: #{tpu_custom_call.1} parent=11 // pred_check
          %p152 = pneg %p104
        $region18: #{tpu_custom_call.1} parent=11 // pred_check_branch
          %154 = sbr.rel (%p152) target = $region20
        $region19: #{tpu_custom_call.1} parent=11 // pred_region
          %s155 = smul.u32 4, %s22
          %p156 = scmp.lt.s32.totalorder %s155, 3
          %s157 = scalar_select %p156, %s155, 3
          %s158 = smul.addr %s157, 8
          %s159 = scalar_lea.vmem %s2, %s158
          %s160 = smul.u32 4, %s22
        $region20: #{tpu_custom_call.1} parent=11 // pred_fallthru
          _
      $region12: #{tpu_custom_call.1} parent=5 // pred_fallthru
        _
      %p161 = scmp.lt.s32.totalorder %s12, 2
      // Predicated region
      $region21: #{tpu_custom_call.1} parent=5 // pred_check
        %p162 = pneg %p161
      $region22: #{tpu_custom_call.1} parent=5 // pred_check_branch
        %164 = sbr.rel (%p162) target = $region24
      $region23: #{tpu_custom_call.1} parent=5 // pred_region
        // Predicated region
        $region25: #{tpu_custom_call.1} parent=23 // pred_check
          %p165 = pneg %p46
        $region26: #{tpu_custom_call.1} parent=23 // pred_check_branch
          %167 = sbr.rel (%p165) target = $region28
        $region27: #{tpu_custom_call.1} parent=23 // pred_region
          %p168 = scmp.lt.s32.totalorder %s19, 1
          %s169 = scalar_select %p168, %s19, 1
          %p170 = scmp.lt.s32.totalorder %s20, 0
          %s171 = scalar_select %p170, %s20, 0
          %s172 = smul.addr %s169, 54
          %s173 = sadd.s32 %s171, %s172
          %s174 = smul.addr %s173, 8
          %s175 = scalar_lea.vmem %s0, %s174
        $region28: #{tpu_custom_call.1} parent=23 // pred_fallthru
          _
      $region24: #{tpu_custom_call.1} parent=5 // pred_fallthru
        _
      %p176 = scmp.le.s32.totalorder 1, %s12
      %p177 = scmp.lt.s32.totalorder %s12, 3
      %p178 = pnand %p176, %p177
      %p179 = pneg %p178
      // Predicated region
      $region29: #{tpu_custom_call.1} parent=5 // pred_check
        _
      $region30: #{tpu_custom_call.1} parent=5 // pred_check_branch
        %181 = sbr.rel (%p178) target = $region32
      $region31: #{tpu_custom_call.1} parent=5 // pred_region
        %s182 = ssub.s32 %s12, 1
        %p183 = scmp.lt.s32.totalorder %s21, 1
        %s184 = scalar_select %p183, %s21, 1
        %p185 = scmp.lt.s32.totalorder %s22, 0
        %s186 = scalar_select %p185, %s22, 0
        %s187 = smul.addr %s184, 54
        %s188 = sadd.s32 %s186, %s187
        %s189 = smul.addr %s188, 8
        %s190 = scalar_lea.vmem %s0, %s189
        %p191 = pneg %p52
        %p192 = pneg %p49
        %p193 = scmp.lt.s32.totalorder %s22, 0
        %s194 = scalar_select %p193, %s22, 0
        %s195 = smul.addr %s194, 4
        %s196 = scalar_lea.vmem %s1, %s195
        %p197 = pneg %p78
        %p198 = pneg %p75
        %s199 = smul.u32 4, %s22
        %p200 = scmp.lt.s32.totalorder %s199, 3
        %s201 = scalar_select %p200, %s199, 3
        %s202 = smul.addr %s201, 8
        %s203 = scalar_lea.vmem %s2, %s202
        %p204 = pneg %p104
        %p205 = pneg %p101
        %p206 = pneg %p130
        %p207 = pneg %p127
        %s208 = sand.u32 %s117, 1
        %s209 = scalar_lea.sflag [#allocation4], %s208
        %s210 = sand.u32 %s117, 1
        %s211 = smul.addr %s210, 256
        %s212 = scalar_lea.vmem [#allocation3], %s211
        %p213 = scmp.lt.s32.totalorder %s21, 1
        %s214 = scalar_select %p213, %s21, 1
        %p215 = scmp.lt.s32.totalorder %s22, 0
        %s216 = scalar_select %p215, %s22, 0
        %s217 = smul.addr %s214, 54
        %s218 = sadd.s32 %s216, %s217
        %s219 = smul.addr %s218, 8
        %s220 = scalar_lea.vmem %s0, %s219
        %p221 = scmp.lt.s32.totalorder %s22, 0
        %s222 = scalar_select %p221, %s22, 0
        %s223 = smul.addr %s222, 4
        %s224 = scalar_lea.vmem %s1, %s223
        %s225 = smul.u32 4, %s22
        %p226 = scmp.lt.s32.totalorder %s225, 3
        %s227 = scalar_select %p226, %s225, 3
        %s228 = smul.addr %s227, 8
        %s229 = scalar_lea.vmem %s2, %s228
        %s230 = smul.u32 4, %s22
        %p231 = scmp.eq.s32.totalorder %s22, 0
        // Predicated region
        $region33: #{tpu_custom_call.1} parent=31 // pred_check
          %p232 = pneg %p231
        $region34: #{tpu_custom_call.1} parent=31 // pred_check_branch
          %234 = sbr.rel (%p232) target = $region36
        $region35: #{tpu_custom_call.1} parent=31 // pred_region
          %vm235 = vcmask 523264
          %236 = vst.msk [vmem:[#allocation2] sm:$0xff] %vm235, 0.0
          %237 = vst.msk [vmem:[#allocation2 + $0x8] sm:$0xff] %vm235, 0.0
          %238 = vst.msk [vmem:[#allocation2 + $0x10] sm:$0xff] %vm235, 0.0
          %239 = vst.msk [vmem:[#allocation2 + $0x18] sm:$0xff] %vm235, 0.0
          %240 = vst.msk [vmem:[#allocation2 + $0x20] sm:$0xff] %vm235, 0.0
          %241 = vst.msk [vmem:[#allocation2 + $0x28] sm:$0xff] %vm235, 0.0
          %242 = vst.msk [vmem:[#allocation2 + $0x30] sm:$0xff] %vm235, 0.0
          %243 = vst.msk [vmem:[#allocation2 + $0x38] sm:$0xff] %vm235, 0.0
          %244 = vst.msk [vmem:[#allocation2 + $0x40] sm:$0xff] %vm235, 0.0
          %245 = vst.msk [vmem:[#allocation2 + $0x48] sm:$0xff] %vm235, 0.0
          %246 = vst.msk [vmem:[#allocation2 + $0x50] sm:$0xff] %vm235, 0.0
          %247 = vst.msk [vmem:[#allocation2 + $0x58] sm:$0xff] %vm235, 0.0
          %248 = vst.msk [vmem:[#allocation2 + $0x60] sm:$0xff] %vm235, 0.0
          %249 = vst.msk [vmem:[#allocation2 + $0x68] sm:$0xff] %vm235, 0.0
          %250 = vst.msk [vmem:[#allocation2 + $0x70] sm:$0xff] %vm235, 0.0
          %251 = vst.msk [vmem:[#allocation2 + $0x78] sm:$0xff] %vm235, 0.0
          %252 = vst.msk [vmem:[#allocation2 + $0x80] sm:$0xff] %vm235, 0.0
          %253 = vst.msk [vmem:[#allocation2 + $0x88] sm:$0xff] %vm235, 0.0
          %254 = vst.msk [vmem:[#allocation2 + $0x90] sm:$0xff] %vm235, 0.0
          %255 = vst.msk [vmem:[#allocation2 + $0x98] sm:$0xff] %vm235, 0.0
          %256 = vst.msk [vmem:[#allocation2 + $0xa0] sm:$0xff] %vm235, 0.0
          %257 = vst.msk [vmem:[#allocation2 + $0xa8] sm:$0xff] %vm235, 0.0
          %258 = vst.msk [vmem:[#allocation2 + $0xb0] sm:$0xff] %vm235, 0.0
          %259 = vst.msk [vmem:[#allocation2 + $0xb8] sm:$0xff] %vm235, 0.0
          %260 = vst.msk [vmem:[#allocation2 + $0xc0] sm:$0xff] %vm235, 0.0
          %261 = vst.msk [vmem:[#allocation2 + $0xc8] sm:$0xff] %vm235, 0.0
          %262 = vst.msk [vmem:[#allocation2 + $0xd0] sm:$0xff] %vm235, 0.0
          %263 = vst.msk [vmem:[#allocation2 + $0xd8] sm:$0xff] %vm235, 0.0
          %264 = vst.msk [vmem:[#allocation2 + $0xe0] sm:$0xff] %vm235, 0.0
          %265 = vst.msk [vmem:[#allocation2 + $0xe8] sm:$0xff] %vm235, 0.0
          %266 = vst.msk [vmem:[#allocation2 + $0xf0] sm:$0xff] %vm235, 0.0
          %267 = vst.msk [vmem:[#allocation2 + $0xf8] sm:$0xff] %vm235, 0.0
        $region36: #{tpu_custom_call.1} parent=31 // pred_fallthru
          _
        %v268 = vld [vmem:[%s220] sm:$0xff]
        %v269 = vld [vmem:[%s220 + $0x8] sm:$0xff]
        %v270 = vld [vmem:[%s220 + $0x10] sm:$0x3]
        %v271 = vld [vmem:[%s220 + $0x18] sm:$0xff]
        %v272 = vld [vmem:[%s220 + $0x20] sm:$0xff]
        %v273 = vld [vmem:[%s220 + $0x28] sm:$0x3]
        %v274 = vld [vmem:[%s220 + $0x30] sm:$0xff]
        %v275 = vld [vmem:[%s220 + $0x38] sm:$0xff]
        %v276 = vld [vmem:[%s220 + $0x40] sm:$0x3]
        %v277 = vld [vmem:[%s220 + $0x48] sm:$0xff]
        %v278 = vld [vmem:[%s220 + $0x50] sm:$0xff]
        %v279 = vld [vmem:[%s220 + $0x58] sm:$0x3]
        %v280 = vld [vmem:[%s220 + $0x60] sm:$0xff]
        %v281 = vld [vmem:[%s220 + $0x68] sm:$0xff]
        %v282 = vld [vmem:[%s220 + $0x70] sm:$0x3]
        %v283 = vld [vmem:[%s220 + $0x78] sm:$0xff]
        %v284 = vld [vmem:[%s220 + $0x80] sm:$0xff]
        %v285 = vld [vmem:[%s220 + $0x88] sm:$0x3]
        %v286 = vld [vmem:[%s220 + $0x90] sm:$0xff]
        %v287 = vld [vmem:[%s220 + $0x98] sm:$0xff]
        %v288 = vld [vmem:[%s220 + $0xa0] sm:$0x3]
        %v289 = vld [vmem:[%s220 + $0xa8] sm:$0xff]
        %v290 = vld [vmem:[%s220 + $0xb0] sm:$0xff]
        %v291 = vld [vmem:[%s220 + $0xb8] sm:$0x3]
        %v292 = vld [vmem:[%s220 + $0xc0] sm:$0xff]
        %v293 = vld [vmem:[%s220 + $0xc8] sm:$0xff]
        %v294 = vld [vmem:[%s220 + $0xd0] sm:$0x3]
        %v295 = vld [vmem:[%s220 + $0xd8] sm:$0xff]
        %v296 = vld [vmem:[%s220 + $0xe0] sm:$0xff]
        %v297 = vld [vmem:[%s220 + $0xe8] sm:$0x3]
        %v298 = vld [vmem:[%s220 + $0xf0] sm:$0xff]
        %v299 = vld [vmem:[%s220 + $0xf8] sm:$0xff]
        %v300 = vld [vmem:[%s220 + $0x100] sm:$0x3]
        %v301 = vld [vmem:[%s220 + $0x108] sm:$0xff]
        %v302 = vld [vmem:[%s220 + $0x110] sm:$0xff]
        %v303 = vld [vmem:[%s220 + $0x118] sm:$0x3]
        %v304 = vld [vmem:[%s220 + $0x120] sm:$0xff]
        %v305 = vld [vmem:[%s220 + $0x128] sm:$0xff]
        %v306 = vld [vmem:[%s220 + $0x130] sm:$0x3]
        %v307 = vld [vmem:[%s220 + $0x138] sm:$0xff]
        %v308 = vld [vmem:[%s220 + $0x140] sm:$0xff]
        %v309 = vld [vmem:[%s220 + $0x148] sm:$0x3]
        %v310 = vld [vmem:[%s220 + $0x150] sm:$0xff]
        %v311 = vld [vmem:[%s220 + $0x158] sm:$0xff]
        %v312 = vld [vmem:[%s220 + $0x160] sm:$0x3]
        %v313 = vld [vmem:[%s220 + $0x168] sm:$0xff]
        %v314 = vld [vmem:[%s220 + $0x170] sm:$0xff]
        %v315 = vld [vmem:[%s220 + $0x178] sm:$0x3]
        %v316 = vld [vmem:[%s220 + $0x180] sm:$0xff]
        %v317 = vld [vmem:[%s220 + $0x188] sm:$0xff]
        %v318 = vld [vmem:[%s220 + $0x190] sm:$0x3]
        %v319 = vld [vmem:[%s220 + $0x198] sm:$0xff]
        %v320 = vld [vmem:[%s220 + $0x1a0] sm:$0xff]
        %v321 = vld [vmem:[%s220 + $0x1a8] sm:$0x3]
        %v322 = vld [vmem:[%s224] sm:$0x7]
        %v323 = vld [vmem:[%s224 + $0x4] sm:$0x7]
        %v324 = vld [vmem:[%s224 + $0x8] sm:$0x7]
        %v325 = vlaneseq
        %v326 = vshrl.u32 %v325, 7
        %v327 = vsub.s32 0, %v326
        %v328 = vrot.slane %v322, %v327
        %v329 = vmul.f32 %v268, %v328
        %v330 = vmul.f32 %v269, %v328
        %v331 = vmul.f32 %v271, %v328
        %v332 = vmul.f32 %v272, %v328
        %v333 = vmul.f32 %v274, %v328
        %v334 = vmul.f32 %v275, %v328
        %v335 = vmul.f32 %v277, %v328
        %v336 = vmul.f32 %v278, %v328
        %v337 = vmul.f32 %v280, %v328
        %v338 = vmul.f32 %v281, %v328
        %v339 = vmul.f32 %v283, %v328
        %v340 = vmul.f32 %v284, %v328
        %v341 = vmul.f32 %v286, %v328
        %v342 = vmul.f32 %v287, %v328
        %v343 = vmul.f32 %v289, %v328
        %v344 = vmul.f32 %v290, %v328
        %v345 = vmul.f32 %v292, %v328
        %v346 = vmul.f32 %v293, %v328
        %v347 = vmul.f32 %v295, %v328
        %v348 = vmul.f32 %v296, %v328
        %v349 = vmul.f32 %v298, %v328
        %v350 = vmul.f32 %v299, %v328
        %v351 = vmul.f32 %v301, %v328
        %v352 = vmul.f32 %v302, %v328
        %v353 = vmul.f32 %v304, %v328
        %v354 = vmul.f32 %v305, %v328
        %v355 = vmul.f32 %v307, %v328
        %v356 = vmul.f32 %v308, %v328
        %v357 = vmul.f32 %v310, %v328
        %v358 = vmul.f32 %v311, %v328
        %v359 = vmul.f32 %v313, %v328
        %v360 = vmul.f32 %v314, %v328
        %v361 = vlaneseq
        %v362 = vshrl.u32 %v361, 7
        %v363 = vsub.s32 1, %v362
        %v364 = vrot.slane %v322, %v363
        %v365 = vmul.f32 %v268, %v364
        %v366 = vmul.f32 %v269, %v364
        %v367 = vmul.f32 %v270, %v364
        %v368 = vmul.f32 %v271, %v364
        %v369 = vmul.f32 %v272, %v364
        %v370 = vmul.f32 %v273, %v364
        %v371 = vmul.f32 %v274, %v364
        %v372 = vmul.f32 %v275, %v364
        %v373 = vmul.f32 %v276, %v364
        %v374 = vmul.f32 %v277, %v364
        %v375 = vmul.f32 %v278, %v364
        %v376 = vmul.f32 %v279, %v364
        %v377 = vmul.f32 %v280, %v364
        %v378 = vmul.f32 %v281, %v364
        %v379 = vmul.f32 %v282, %v364
        %v380 = vmul.f32 %v283, %v364
        %v381 = vmul.f32 %v284, %v364
        %v382 = vmul.f32 %v285, %v364
        %v383 = vmul.f32 %v286, %v364
        %v384 = vmul.f32 %v287, %v364
        %v385 = vmul.f32 %v288, %v364
        %v386 = vmul.f32 %v289, %v364
        %v387 = vmul.f32 %v290, %v364
        %v388 = vmul.f32 %v291, %v364
        %v389 = vmul.f32 %v292, %v364
        %v390 = vmul.f32 %v293, %v364
        %v391 = vmul.f32 %v294, %v364
        %v392 = vmul.f32 %v295, %v364
        %v393 = vmul.f32 %v296, %v364
        %v394 = vmul.f32 %v297, %v364
        %v395 = vmul.f32 %v298, %v364
        %v396 = vmul.f32 %v299, %v364
        %v397 = vmul.f32 %v300, %v364
        %v398 = vmul.f32 %v301, %v364
        %v399 = vmul.f32 %v302, %v364
        %v400 = vmul.f32 %v303, %v364
        %v401 = vmul.f32 %v304, %v364
        %v402 = vmul.f32 %v305, %v364
        %v403 = vmul.f32 %v306, %v364
        %v404 = vmul.f32 %v307, %v364
        %v405 = vmul.f32 %v308, %v364
        %v406 = vmul.f32 %v309, %v364
        %v407 = vmul.f32 %v310, %v364
        %v408 = vmul.f32 %v311, %v364
        %v409 = vmul.f32 %v312, %v364
        %v410 = vmul.f32 %v313, %v364
        %v411 = vmul.f32 %v314, %v364
        %v412 = vmul.f32 %v315, %v364
        %vm461 = vcmask 1046528
        %v462 = vrot.slane %v365, 1
        %v463 = vrot.slane %v366, 1
        %v464 = vsel %vm461, %v462, %v463
        %v465 = vrot.slane %v367, 1
        %v466 = vsel %vm461, %v463, %v465
        %v467 = vrot.slane %v368, 1
        %v468 = vrot.slane %v369, 1
        %v469 = vsel %vm461, %v467, %v468
        %v470 = vrot.slane %v370, 1
        %v471 = vsel %vm461, %v468, %v470
        %v472 = vrot.slane %v371, 1
        %v473 = vrot.slane %v372, 1
        %v474 = vsel %vm461, %v472, %v473
        %v475 = vrot.slane %v373, 1
        %v476 = vsel %vm461, %v473, %v475
        %v477 = vrot.slane %v374, 1
        %v478 = vrot.slane %v375, 1
        %v479 = vsel %vm461, %v477, %v478
        %v480 = vrot.slane %v376, 1
        %v481 = vsel %vm461, %v478, %v480
        %v482 = vrot.slane %v377, 1
        %v483 = vrot.slane %v378, 1
        %v484 = vsel %vm461, %v482, %v483
        %v485 = vrot.slane %v379, 1
        %v486 = vsel %vm461, %v483, %v485
        %v487 = vrot.slane %v380, 1
        %v488 = vrot.slane %v381, 1
        %v489 = vsel %vm461, %v487, %v488
        %v490 = vrot.slane %v382, 1
        %v491 = vsel %vm461, %v488, %v490
        %v492 = vrot.slane %v383, 1
        %v493 = vrot.slane %v384, 1
        %v494 = vsel %vm461, %v492, %v493
        %v495 = vrot.slane %v385, 1
        %v496 = vsel %vm461, %v493, %v495
        %v497 = vrot.slane %v386, 1
        %v498 = vrot.slane %v387, 1
        %v499 = vsel %vm461, %v497, %v498
        %v500 = vrot.slane %v388, 1
        %v501 = vsel %vm461, %v498, %v500
        %v502 = vrot.slane %v389, 1
        %v503 = vrot.slane %v390, 1
        %v504 = vsel %vm461, %v502, %v503
        %v505 = vrot.slane %v391, 1
        %v506 = vsel %vm461, %v503, %v505
        %v507 = vrot.slane %v392, 1
        %v508 = vrot.slane %v393, 1
        %v509 = vsel %vm461, %v507, %v508
        %v510 = vrot.slane %v394, 1
        %v511 = vsel %vm461, %v508, %v510
        %v512 = vrot.slane %v395, 1
        %v513 = vrot.slane %v396, 1
        %v514 = vsel %vm461, %v512, %v513
        %v515 = vrot.slane %v397, 1
        %v516 = vsel %vm461, %v513, %v515
        %v517 = vrot.slane %v398, 1
        %v518 = vrot.slane %v399, 1
        %v519 = vsel %vm461, %v517, %v518
        %v520 = vrot.slane %v400, 1
        %v521 = vsel %vm461, %v518, %v520
        %v522 = vrot.slane %v401, 1
        %v523 = vrot.slane %v402, 1
        %v524 = vsel %vm461, %v522, %v523
        %v525 = vrot.slane %v403, 1
        %v526 = vsel %vm461, %v523, %v525
        %v527 = vrot.slane %v404, 1
        %v528 = vrot.slane %v405, 1
        %v529 = vsel %vm461, %v527, %v528
        %v530 = vrot.slane %v406, 1
        %v531 = vsel %vm461, %v528, %v530
        %v532 = vrot.slane %v407, 1
        %v533 = vrot.slane %v408, 1
        %v534 = vsel %vm461, %v532, %v533
        %v535 = vrot.slane %v409, 1
        %v536 = vsel %vm461, %v533, %v535
        %v537 = vrot.slane %v410, 1
        %v538 = vrot.slane %v411, 1
        %v539 = vsel %vm461, %v537, %v538
        %v540 = vrot.slane %v412, 1
        %v541 = vsel %vm461, %v538, %v540
        %v574 = vadd.f32 %v329, %v464
        %v575 = vadd.f32 %v330, %v466
        %v576 = vadd.f32 %v331, %v469
        %v577 = vadd.f32 %v332, %v471
        %v578 = vadd.f32 %v333, %v474
        %v579 = vadd.f32 %v334, %v476
        %v580 = vadd.f32 %v335, %v479
        %v581 = vadd.f32 %v336, %v481
        %v582 = vadd.f32 %v337, %v484
        %v583 = vadd.f32 %v338, %v486
        %v584 = vadd.f32 %v339, %v489
        %v585 = vadd.f32 %v340, %v491
        %v586 = vadd.f32 %v341, %v494
        %v587 = vadd.f32 %v342, %v496
        %v588 = vadd.f32 %v343, %v499
        %v589 = vadd.f32 %v344, %v501
        %v590 = vadd.f32 %v345, %v504
        %v591 = vadd.f32 %v346, %v506
        %v592 = vadd.f32 %v347, %v509
        %v593 = vadd.f32 %v348, %v511
        %v594 = vadd.f32 %v349, %v514
        %v595 = vadd.f32 %v350, %v516
        %v596 = vadd.f32 %v351, %v519
        %v597 = vadd.f32 %v352, %v521
        %v598 = vadd.f32 %v353, %v524
        %v599 = vadd.f32 %v354, %v526
        %v600 = vadd.f32 %v355, %v529
        %v601 = vadd.f32 %v356, %v531
        %v602 = vadd.f32 %v357, %v534
        %v603 = vadd.f32 %v358, %v536
        %v604 = vadd.f32 %v359, %v539
        %v605 = vadd.f32 %v360, %v541
        %v606 = vlaneseq
        %v607 = vshrl.u32 %v606, 7
        %v608 = vsub.s32 2, %v607
        %v609 = vrot.slane %v322, %v608
        %v610 = vmul.f32 %v268, %v609
        %v611 = vmul.f32 %v269, %v609
        %v612 = vmul.f32 %v270, %v609
        %v613 = vmul.f32 %v271, %v609
        %v614 = vmul.f32 %v272, %v609
        %v615 = vmul.f32 %v273, %v609
        %v616 = vmul.f32 %v274, %v609
        %v617 = vmul.f32 %v275, %v609
        %v618 = vmul.f32 %v276, %v609
        %v619 = vmul.f32 %v277, %v609
        %v620 = vmul.f32 %v278, %v609
        %v621 = vmul.f32 %v279, %v609
        %v622 = vmul.f32 %v280, %v609
        %v623 = vmul.f32 %v281, %v609
        %v624 = vmul.f32 %v282, %v609
        %v625 = vmul.f32 %v283, %v609
        %v626 = vmul.f32 %v284, %v609
        %v627 = vmul.f32 %v285, %v609
        %v628 = vmul.f32 %v286, %v609
        %v629 = vmul.f32 %v287, %v609
        %v630 = vmul.f32 %v288, %v609
        %v631 = vmul.f32 %v289, %v609
        %v632 = vmul.f32 %v290, %v609
        %v633 = vmul.f32 %v291, %v609
        %v634 = vmul.f32 %v292, %v609
        %v635 = vmul.f32 %v293, %v609
        %v636 = vmul.f32 %v294, %v609
        %v637 = vmul.f32 %v295, %v609
        %v638 = vmul.f32 %v296, %v609
        %v639 = vmul.f32 %v297, %v609
        %v640 = vmul.f32 %v298, %v609
        %v641 = vmul.f32 %v299, %v609
        %v642 = vmul.f32 %v300, %v609
        %v643 = vmul.f32 %v301, %v609
        %v644 = vmul.f32 %v302, %v609
        %v645 = vmul.f32 %v303, %v609
        %v646 = vmul.f32 %v304, %v609
        %v647 = vmul.f32 %v305, %v609
        %v648 = vmul.f32 %v306, %v609
        %v649 = vmul.f32 %v307, %v609
        %v650 = vmul.f32 %v308, %v609
        %v651 = vmul.f32 %v309, %v609
        %v652 = vmul.f32 %v310, %v609
        %v653 = vmul.f32 %v311, %v609
        %v654 = vmul.f32 %v312, %v609
        %v655 = vmul.f32 %v313, %v609
        %v656 = vmul.f32 %v314, %v609
        %v657 = vmul.f32 %v315, %v609
        %vm706 = vcmask 1045504
        %v707 = vrot.slane %v610, 2
        %v708 = vrot.slane %v611, 2
        %v709 = vsel %vm706, %v707, %v708
        %v710 = vrot.slane %v612, 2
        %v711 = vsel %vm706, %v708, %v710
        %v712 = vrot.slane %v613, 2
        %v713 = vrot.slane %v614, 2
        %v714 = vsel %vm706, %v712, %v713
        %v715 = vrot.slane %v615, 2
        %v716 = vsel %vm706, %v713, %v715
        %v717 = vrot.slane %v616, 2
        %v718 = vrot.slane %v617, 2
        %v719 = vsel %vm706, %v717, %v718
        %v720 = vrot.slane %v618, 2
        %v721 = vsel %vm706, %v718, %v720
        %v722 = vrot.slane %v619, 2
        %v723 = vrot.slane %v620, 2
        %v724 = vsel %vm706, %v722, %v723
        %v725 = vrot.slane %v621, 2
        %v726 = vsel %vm706, %v723, %v725
        %v727 = vrot.slane %v622, 2
        %v728 = vrot.slane %v623, 2
        %v729 = vsel %vm706, %v727, %v728
        %v730 = vrot.slane %v624, 2
        %v731 = vsel %vm706, %v728, %v730
        %v732 = vrot.slane %v625, 2
        %v733 = vrot.slane %v626, 2
        %v734 = vsel %vm706, %v732, %v733
        %v735 = vrot.slane %v627, 2
        %v736 = vsel %vm706, %v733, %v735
        %v737 = vrot.slane %v628, 2
        %v738 = vrot.slane %v629, 2
        %v739 = vsel %vm706, %v737, %v738
        %v740 = vrot.slane %v630, 2
        %v741 = vsel %vm706, %v738, %v740
        %v742 = vrot.slane %v631, 2
        %v743 = vrot.slane %v632, 2
        %v744 = vsel %vm706, %v742, %v743
        %v745 = vrot.slane %v633, 2
        %v746 = vsel %vm706, %v743, %v745
        %v747 = vrot.slane %v634, 2
        %v748 = vrot.slane %v635, 2
        %v749 = vsel %vm706, %v747, %v748
        %v750 = vrot.slane %v636, 2
        %v751 = vsel %vm706, %v748, %v750
        %v752 = vrot.slane %v637, 2
        %v753 = vrot.slane %v638, 2
        %v754 = vsel %vm706, %v752, %v753
        %v755 = vrot.slane %v639, 2
        %v756 = vsel %vm706, %v753, %v755
        %v757 = vrot.slane %v640, 2
        %v758 = vrot.slane %v641, 2
        %v759 = vsel %vm706, %v757, %v758
        %v760 = vrot.slane %v642, 2
        %v761 = vsel %vm706, %v758, %v760
        %v762 = vrot.slane %v643, 2
        %v763 = vrot.slane %v644, 2
        %v764 = vsel %vm706, %v762, %v763
        %v765 = vrot.slane %v645, 2
        %v766 = vsel %vm706, %v763, %v765
        %v767 = vrot.slane %v646, 2
        %v768 = vrot.slane %v647, 2
        %v769 = vsel %vm706, %v767, %v768
        %v770 = vrot.slane %v648, 2
        %v771 = vsel %vm706, %v768, %v770
        %v772 = vrot.slane %v649, 2
        %v773 = vrot.slane %v650, 2
        %v774 = vsel %vm706, %v772, %v773
        %v775 = vrot.slane %v651, 2
        %v776 = vsel %vm706, %v773, %v775
        %v777 = vrot.slane %v652, 2
        %v778 = vrot.slane %v653, 2
        %v779 = vsel %vm706, %v777, %v778
        %v780 = vrot.slane %v654, 2
        %v781 = vsel %vm706, %v778, %v780
        %v782 = vrot.slane %v655, 2
        %v783 = vrot.slane %v656, 2
        %v784 = vsel %vm706, %v782, %v783
        %v785 = vrot.slane %v657, 2
        %v786 = vsel %vm706, %v783, %v785
        %v819 = vadd.f32 %v574, %v709
        %v820 = vadd.f32 %v575, %v711
        %v821 = vadd.f32 %v576, %v714
        %v822 = vadd.f32 %v577, %v716
        %v823 = vadd.f32 %v578, %v719
        %v824 = vadd.f32 %v579, %v721
        %v825 = vadd.f32 %v580, %v724
        %v826 = vadd.f32 %v581, %v726
        %v827 = vadd.f32 %v582, %v729
        %v828 = vadd.f32 %v583, %v731
        %v829 = vadd.f32 %v584, %v734
        %v830 = vadd.f32 %v585, %v736
        %v831 = vadd.f32 %v586, %v739
        %v832 = vadd.f32 %v587, %v741
        %v833 = vadd.f32 %v588, %v744
        %v834 = vadd.f32 %v589, %v746
        %v835 = vadd.f32 %v590, %v749
        %v836 = vadd.f32 %v591, %v751
        %v837 = vadd.f32 %v592, %v754
        %v838 = vadd.f32 %v593, %v756
        %v839 = vadd.f32 %v594, %v759
        %v840 = vadd.f32 %v595, %v761
        %v841 = vadd.f32 %v596, %v764
        %v842 = vadd.f32 %v597, %v766
        %v843 = vadd.f32 %v598, %v769
        %v844 = vadd.f32 %v599, %v771
        %v845 = vadd.f32 %v600, %v774
        %v846 = vadd.f32 %v601, %v776
        %v847 = vadd.f32 %v602, %v779
        %v848 = vadd.f32 %v603, %v781
        %v849 = vadd.f32 %v604, %v784
        %v850 = vadd.f32 %v605, %v786
        %v851 = vlaneseq
        %v852 = vshrl.u32 %v851, 7
        %v853 = vsub.s32 0, %v852
        %v854 = vrot.slane %v323, %v853
        %v855 = vmul.f32 %v271, %v854
        %v856 = vmul.f32 %v272, %v854
        %v857 = vmul.f32 %v274, %v854
        %v858 = vmul.f32 %v275, %v854
        %v859 = vmul.f32 %v277, %v854
        %v860 = vmul.f32 %v278, %v854
        %v861 = vmul.f32 %v280, %v854
        %v862 = vmul.f32 %v281, %v854
        %v863 = vmul.f32 %v283, %v854
        %v864 = vmul.f32 %v284, %v854
        %v865 = vmul.f32 %v286, %v854
        %v866 = vmul.f32 %v287, %v854
        %v867 = vmul.f32 %v289, %v854
        %v868 = vmul.f32 %v290, %v854
        %v869 = vmul.f32 %v292, %v854
        %v870 = vmul.f32 %v293, %v854
        %v871 = vmul.f32 %v295, %v854
        %v872 = vmul.f32 %v296, %v854
        %v873 = vmul.f32 %v298, %v854
        %v874 = vmul.f32 %v299, %v854
        %v875 = vmul.f32 %v301, %v854
        %v876 = vmul.f32 %v302, %v854
        %v877 = vmul.f32 %v304, %v854
        %v878 = vmul.f32 %v305, %v854
        %v879 = vmul.f32 %v307, %v854
        %v880 = vmul.f32 %v308, %v854
        %v881 = vmul.f32 %v310, %v854
        %v882 = vmul.f32 %v311, %v854
        %v883 = vmul.f32 %v313, %v854
        %v884 = vmul.f32 %v314, %v854
        %v885 = vmul.f32 %v316, %v854
        %v886 = vmul.f32 %v317, %v854
        %v887 = vadd.f32 %v819, %v855
        %v888 = vadd.f32 %v820, %v856
        %v889 = vadd.f32 %v821, %v857
        %v890 = vadd.f32 %v822, %v858
        %v891 = vadd.f32 %v823, %v859
        %v892 = vadd.f32 %v824, %v860
        %v893 = vadd.f32 %v825, %v861
        %v894 = vadd.f32 %v826, %v862
        %v895 = vadd.f32 %v827, %v863
        %v896 = vadd.f32 %v828, %v864
        %v897 = vadd.f32 %v829, %v865
        %v898 = vadd.f32 %v830, %v866
        %v899 = vadd.f32 %v831, %v867
        %v900 = vadd.f32 %v832, %v868
        %v901 = vadd.f32 %v833, %v869
        %v902 = vadd.f32 %v834, %v870
        %v903 = vadd.f32 %v835, %v871
        %v904 = vadd.f32 %v836, %v872
        %v905 = vadd.f32 %v837, %v873
        %v906 = vadd.f32 %v838, %v874
        %v907 = vadd.f32 %v839, %v875
        %v908 = vadd.f32 %v840, %v876
        %v909 = vadd.f32 %v841, %v877
        %v910 = vadd.f32 %v842, %v878
        %v911 = vadd.f32 %v843, %v879
        %v912 = vadd.f32 %v844, %v880
        %v913 = vadd.f32 %v845, %v881
        %v914 = vadd.f32 %v846, %v882
        %v915 = vadd.f32 %v847, %v883
        %v916 = vadd.f32 %v848, %v884
        %v917 = vadd.f32 %v849, %v885
        %v918 = vadd.f32 %v850, %v886
        %v919 = vlaneseq
        %v920 = vshrl.u32 %v919, 7
        %v921 = vsub.s32 1, %v920
        %v922 = vrot.slane %v323, %v921
        %v923 = vmul.f32 %v271, %v922
        %v924 = vmul.f32 %v272, %v922
        %v925 = vmul.f32 %v273, %v922
        %v926 = vmul.f32 %v274, %v922
        %v927 = vmul.f32 %v275, %v922
        %v928 = vmul.f32 %v276, %v922
        %v929 = vmul.f32 %v277, %v922
        %v930 = vmul.f32 %v278, %v922
        %v931 = vmul.f32 %v279, %v922
        %v932 = vmul.f32 %v280, %v922
        %v933 = vmul.f32 %v281, %v922
        %v934 = vmul.f32 %v282, %v922
        %v935 = vmul.f32 %v283, %v922
        %v936 = vmul.f32 %v284, %v922
        %v937 = vmul.f32 %v285, %v922
        %v938 = vmul.f32 %v286, %v922
        %v939 = vmul.f32 %v287, %v922
        %v940 = vmul.f32 %v288, %v922
        %v941 = vmul.f32 %v289, %v922
        %v942 = vmul.f32 %v290, %v922
        %v943 = vmul.f32 %v291, %v922
        %v944 = vmul.f32 %v292, %v922
        %v945 = vmul.f32 %v293, %v922
        %v946 = vmul.f32 %v294, %v922
        %v947 = vmul.f32 %v295, %v922
        %v948 = vmul.f32 %v296, %v922
        %v949 = vmul.f32 %v297, %v922
        %v950 = vmul.f32 %v298, %v922
        %v951 = vmul.f32 %v299, %v922
        %v952 = vmul.f32 %v300, %v922
        %v953 = vmul.f32 %v301, %v922
        %v954 = vmul.f32 %v302, %v922
        %v955 = vmul.f32 %v303, %v922
        %v956 = vmul.f32 %v304, %v922
        %v957 = vmul.f32 %v305, %v922
        %v958 = vmul.f32 %v306, %v922
        %v959 = vmul.f32 %v307, %v922
        %v960 = vmul.f32 %v308, %v922
        %v961 = vmul.f32 %v309, %v922
        %v962 = vmul.f32 %v310, %v922
        %v963 = vmul.f32 %v311, %v922
        %v964 = vmul.f32 %v312, %v922
        %v965 = vmul.f32 %v313, %v922
        %v966 = vmul.f32 %v314, %v922
        %v967 = vmul.f32 %v315, %v922
        %v968 = vmul.f32 %v316, %v922
        %v969 = vmul.f32 %v317, %v922
        %v970 = vmul.f32 %v318, %v922
        %v1019 = vrot.slane %v923, 1
        %v1020 = vrot.slane %v924, 1
        %v1021 = vsel %vm461, %v1019, %v1020
        %v1022 = vrot.slane %v925, 1
        %v1023 = vsel %vm461, %v1020, %v1022
        %v1024 = vrot.slane %v926, 1
        %v1025 = vrot.slane %v927, 1
        %v1026 = vsel %vm461, %v1024, %v1025
        %v1027 = vrot.slane %v928, 1
        %v1028 = vsel %vm461, %v1025, %v1027
        %v1029 = vrot.slane %v929, 1
        %v1030 = vrot.slane %v930, 1
        %v1031 = vsel %vm461, %v1029, %v1030
        %v1032 = vrot.slane %v931, 1
        %v1033 = vsel %vm461, %v1030, %v1032
        %v1034 = vrot.slane %v932, 1
        %v1035 = vrot.slane %v933, 1
        %v1036 = vsel %vm461, %v1034, %v1035
        %v1037 = vrot.slane %v934, 1
        %v1038 = vsel %vm461, %v1035, %v1037
        %v1039 = vrot.slane %v935, 1
        %v1040 = vrot.slane %v936, 1
        %v1041 = vsel %vm461, %v1039, %v1040
        %v1042 = vrot.slane %v937, 1
        %v1043 = vsel %vm461, %v1040, %v1042
        %v1044 = vrot.slane %v938, 1
        %v1045 = vrot.slane %v939, 1
        %v1046 = vsel %vm461, %v1044, %v1045
        %v1047 = vrot.slane %v940, 1
        %v1048 = vsel %vm461, %v1045, %v1047
        %v1049 = vrot.slane %v941, 1
        %v1050 = vrot.slane %v942, 1
        %v1051 = vsel %vm461, %v1049, %v1050
        %v1052 = vrot.slane %v943, 1
        %v1053 = vsel %vm461, %v1050, %v1052
        %v1054 = vrot.slane %v944, 1
        %v1055 = vrot.slane %v945, 1
        %v1056 = vsel %vm461, %v1054, %v1055
        %v1057 = vrot.slane %v946, 1
        %v1058 = vsel %vm461, %v1055, %v1057
        %v1059 = vrot.slane %v947, 1
        %v1060 = vrot.slane %v948, 1
        %v1061 = vsel %vm461, %v1059, %v1060
        %v1062 = vrot.slane %v949, 1
        %v1063 = vsel %vm461, %v1060, %v1062
        %v1064 = vrot.slane %v950, 1
        %v1065 = vrot.slane %v951, 1
        %v1066 = vsel %vm461, %v1064, %v1065
        %v1067 = vrot.slane %v952, 1
        %v1068 = vsel %vm461, %v1065, %v1067
        %v1069 = vrot.slane %v953, 1
        %v1070 = vrot.slane %v954, 1
        %v1071 = vsel %vm461, %v1069, %v1070
        %v1072 = vrot.slane %v955, 1
        %v1073 = vsel %vm461, %v1070, %v1072
        %v1074 = vrot.slane %v956, 1
        %v1075 = vrot.slane %v957, 1
        %v1076 = vsel %vm461, %v1074, %v1075
        %v1077 = vrot.slane %v958, 1
        %v1078 = vsel %vm461, %v1075, %v1077
        %v1079 = vrot.slane %v959, 1
        %v1080 = vrot.slane %v960, 1
        %v1081 = vsel %vm461, %v1079, %v1080
        %v1082 = vrot.slane %v961, 1
        %v1083 = vsel %vm461, %v1080, %v1082
        %v1084 = vrot.slane %v962, 1
        %v1085 = vrot.slane %v963, 1
        %v1086 = vsel %vm461, %v1084, %v1085
        %v1087 = vrot.slane %v964, 1
        %v1088 = vsel %vm461, %v1085, %v1087
        %v1089 = vrot.slane %v965, 1
        %v1090 = vrot.slane %v966, 1
        %v1091 = vsel %vm461, %v1089, %v1090
        %v1092 = vrot.slane %v967, 1
        %v1093 = vsel %vm461, %v1090, %v1092
        %v1094 = vrot.slane %v968, 1
        %v1095 = vrot.slane %v969, 1
        %v1096 = vsel %vm461, %v1094, %v1095
        %v1097 = vrot.slane %v970, 1
        %v1098 = vsel %vm461, %v1095, %v1097
        %v1131 = vadd.f32 %v887, %v1021
        %v1132 = vadd.f32 %v888, %v1023
        %v1133 = vadd.f32 %v889, %v1026
        %v1134 = vadd.f32 %v890, %v1028
        %v1135 = vadd.f32 %v891, %v1031
        %v1136 = vadd.f32 %v892, %v1033
        %v1137 = vadd.f32 %v893, %v1036
        %v1138 = vadd.f32 %v894, %v1038
        %v1139 = vadd.f32 %v895, %v1041
        %v1140 = vadd.f32 %v896, %v1043
        %v1141 = vadd.f32 %v897, %v1046
        %v1142 = vadd.f32 %v898, %v1048
        %v1143 = vadd.f32 %v899, %v1051
        %v1144 = vadd.f32 %v900, %v1053
        %v1145 = vadd.f32 %v901, %v1056
        %v1146 = vadd.f32 %v902, %v1058
        %v1147 = vadd.f32 %v903, %v1061
        %v1148 = vadd.f32 %v904, %v1063
        %v1149 = vadd.f32 %v905, %v1066
        %v1150 = vadd.f32 %v906, %v1068
        %v1151 = vadd.f32 %v907, %v1071
        %v1152 = vadd.f32 %v908, %v1073
        %v1153 = vadd.f32 %v909, %v1076
        %v1154 = vadd.f32 %v910, %v1078
        %v1155 = vadd.f32 %v911, %v1081
        %v1156 = vadd.f32 %v912, %v1083
        %v1157 = vadd.f32 %v913, %v1086
        %v1158 = vadd.f32 %v914, %v1088
        %v1159 = vadd.f32 %v915, %v1091
        %v1160 = vadd.f32 %v916, %v1093
        %v1161 = vadd.f32 %v917, %v1096
        %v1162 = vadd.f32 %v918, %v1098
        %v1163 = vlaneseq
        %v1164 = vshrl.u32 %v1163, 7
        %v1165 = vsub.s32 2, %v1164
        %v1166 = vrot.slane %v323, %v1165
        %v1167 = vmul.f32 %v271, %v1166
        %v1168 = vmul.f32 %v272, %v1166
        %v1169 = vmul.f32 %v273, %v1166
        %v1170 = vmul.f32 %v274, %v1166
        %v1171 = vmul.f32 %v275, %v1166
        %v1172 = vmul.f32 %v276, %v1166
        %v1173 = vmul.f32 %v277, %v1166
        %v1174 = vmul.f32 %v278, %v1166
        %v1175 = vmul.f32 %v279, %v1166
        %v1176 = vmul.f32 %v280, %v1166
        %v1177 = vmul.f32 %v281, %v1166
        %v1178 = vmul.f32 %v282, %v1166
        %v1179 = vmul.f32 %v283, %v1166
        %v1180 = vmul.f32 %v284, %v1166
        %v1181 = vmul.f32 %v285, %v1166
        %v1182 = vmul.f32 %v286, %v1166
        %v1183 = vmul.f32 %v287, %v1166
        %v1184 = vmul.f32 %v288, %v1166
        %v1185 = vmul.f32 %v289, %v1166
        %v1186 = vmul.f32 %v290, %v1166
        %v1187 = vmul.f32 %v291, %v1166
        %v1188 = vmul.f32 %v292, %v1166
        %v1189 = vmul.f32 %v293, %v1166
        %v1190 = vmul.f32 %v294, %v1166
        %v1191 = vmul.f32 %v295, %v1166
        %v1192 = vmul.f32 %v296, %v1166
        %v1193 = vmul.f32 %v297, %v1166
        %v1194 = vmul.f32 %v298, %v1166
        %v1195 = vmul.f32 %v299, %v1166
        %v1196 = vmul.f32 %v300, %v1166
        %v1197 = vmul.f32 %v301, %v1166
        %v1198 = vmul.f32 %v302, %v1166
        %v1199 = vmul.f32 %v303, %v1166
        %v1200 = vmul.f32 %v304, %v1166
        %v1201 = vmul.f32 %v305, %v1166
        %v1202 = vmul.f32 %v306, %v1166
        %v1203 = vmul.f32 %v307, %v1166
        %v1204 = vmul.f32 %v308, %v1166
        %v1205 = vmul.f32 %v309, %v1166
        %v1206 = vmul.f32 %v310, %v1166
        %v1207 = vmul.f32 %v311, %v1166
        %v1208 = vmul.f32 %v312, %v1166
        %v1209 = vmul.f32 %v313, %v1166
        %v1210 = vmul.f32 %v314, %v1166
        %v1211 = vmul.f32 %v315, %v1166
        %v1212 = vmul.f32 %v316, %v1166
        %v1213 = vmul.f32 %v317, %v1166
        %v1214 = vmul.f32 %v318, %v1166
        %v1263 = vrot.slane %v1167, 2
        %v1264 = vrot.slane %v1168, 2
        %v1265 = vsel %vm706, %v1263, %v1264
        %v1266 = vrot.slane %v1169, 2
        %v1267 = vsel %vm706, %v1264, %v1266
        %v1268 = vrot.slane %v1170, 2
        %v1269 = vrot.slane %v1171, 2
        %v1270 = vsel %vm706, %v1268, %v1269
        %v1271 = vrot.slane %v1172, 2
        %v1272 = vsel %vm706, %v1269, %v1271
        %v1273 = vrot.slane %v1173, 2
        %v1274 = vrot.slane %v1174, 2
        %v1275 = vsel %vm706, %v1273, %v1274
        %v1276 = vrot.slane %v1175, 2
        %v1277 = vsel %vm706, %v1274, %v1276
        %v1278 = vrot.slane %v1176, 2
        %v1279 = vrot.slane %v1177, 2
        %v1280 = vsel %vm706, %v1278, %v1279
        %v1281 = vrot.slane %v1178, 2
        %v1282 = vsel %vm706, %v1279, %v1281
        %v1283 = vrot.slane %v1179, 2
        %v1284 = vrot.slane %v1180, 2
        %v1285 = vsel %vm706, %v1283, %v1284
        %v1286 = vrot.slane %v1181, 2
        %v1287 = vsel %vm706, %v1284, %v1286
        %v1288 = vrot.slane %v1182, 2
        %v1289 = vrot.slane %v1183, 2
        %v1290 = vsel %vm706, %v1288, %v1289
        %v1291 = vrot.slane %v1184, 2
        %v1292 = vsel %vm706, %v1289, %v1291
        %v1293 = vrot.slane %v1185, 2
        %v1294 = vrot.slane %v1186, 2
        %v1295 = vsel %vm706, %v1293, %v1294
        %v1296 = vrot.slane %v1187, 2
        %v1297 = vsel %vm706, %v1294, %v1296
        %v1298 = vrot.slane %v1188, 2
        %v1299 = vrot.slane %v1189, 2
        %v1300 = vsel %vm706, %v1298, %v1299
        %v1301 = vrot.slane %v1190, 2
        %v1302 = vsel %vm706, %v1299, %v1301
        %v1303 = vrot.slane %v1191, 2
        %v1304 = vrot.slane %v1192, 2
        %v1305 = vsel %vm706, %v1303, %v1304
        %v1306 = vrot.slane %v1193, 2
        %v1307 = vsel %vm706, %v1304, %v1306
        %v1308 = vrot.slane %v1194, 2
        %v1309 = vrot.slane %v1195, 2
        %v1310 = vsel %vm706, %v1308, %v1309
        %v1311 = vrot.slane %v1196, 2
        %v1312 = vsel %vm706, %v1309, %v1311
        %v1313 = vrot.slane %v1197, 2
        %v1314 = vrot.slane %v1198, 2
        %v1315 = vsel %vm706, %v1313, %v1314
        %v1316 = vrot.slane %v1199, 2
        %v1317 = vsel %vm706, %v1314, %v1316
        %v1318 = vrot.slane %v1200, 2
        %v1319 = vrot.slane %v1201, 2
        %v1320 = vsel %vm706, %v1318, %v1319
        %v1321 = vrot.slane %v1202, 2
        %v1322 = vsel %vm706, %v1319, %v1321
        %v1323 = vrot.slane %v1203, 2
        %v1324 = vrot.slane %v1204, 2
        %v1325 = vsel %vm706, %v1323, %v1324
        %v1326 = vrot.slane %v1205, 2
        %v1327 = vsel %vm706, %v1324, %v1326
        %v1328 = vrot.slane %v1206, 2
        %v1329 = vrot.slane %v1207, 2
        %v1330 = vsel %vm706, %v1328, %v1329
        %v1331 = vrot.slane %v1208, 2
        %v1332 = vsel %vm706, %v1329, %v1331
        %v1333 = vrot.slane %v1209, 2
        %v1334 = vrot.slane %v1210, 2
        %v1335 = vsel %vm706, %v1333, %v1334
        %v1336 = vrot.slane %v1211, 2
        %v1337 = vsel %vm706, %v1334, %v1336
        %v1338 = vrot.slane %v1212, 2
        %v1339 = vrot.slane %v1213, 2
        %v1340 = vsel %vm706, %v1338, %v1339
        %v1341 = vrot.slane %v1214, 2
        %v1342 = vsel %vm706, %v1339, %v1341
        %v1375 = vadd.f32 %v1131, %v1265
        %v1376 = vadd.f32 %v1132, %v1267
        %v1377 = vadd.f32 %v1133, %v1270
        %v1378 = vadd.f32 %v1134, %v1272
        %v1379 = vadd.f32 %v1135, %v1275
        %v1380 = vadd.f32 %v1136, %v1277
        %v1381 = vadd.f32 %v1137, %v1280
        %v1382 = vadd.f32 %v1138, %v1282
        %v1383 = vadd.f32 %v1139, %v1285
        %v1384 = vadd.f32 %v1140, %v1287
        %v1385 = vadd.f32 %v1141, %v1290
        %v1386 = vadd.f32 %v1142, %v1292
        %v1387 = vadd.f32 %v1143, %v1295
        %v1388 = vadd.f32 %v1144, %v1297
        %v1389 = vadd.f32 %v1145, %v1300
        %v1390 = vadd.f32 %v1146, %v1302
        %v1391 = vadd.f32 %v1147, %v1305
        %v1392 = vadd.f32 %v1148, %v1307
        %v1393 = vadd.f32 %v1149, %v1310
        %v1394 = vadd.f32 %v1150, %v1312
        %v1395 = vadd.f32 %v1151, %v1315
        %v1396 = vadd.f32 %v1152, %v1317
        %v1397 = vadd.f32 %v1153, %v1320
        %v1398 = vadd.f32 %v1154, %v1322
        %v1399 = vadd.f32 %v1155, %v1325
        %v1400 = vadd.f32 %v1156, %v1327
        %v1401 = vadd.f32 %v1157, %v1330
        %v1402 = vadd.f32 %v1158, %v1332
        %v1403 = vadd.f32 %v1159, %v1335
        %v1404 = vadd.f32 %v1160, %v1337
        %v1405 = vadd.f32 %v1161, %v1340
        %v1406 = vadd.f32 %v1162, %v1342
        %v1407 = vlaneseq
        %v1408 = vshrl.u32 %v1407, 7
        %v1409 = vsub.s32 0, %v1408
        %v1410 = vrot.slane %v324, %v1409
        %v1411 = vmul.f32 %v274, %v1410
        %v1412 = vmul.f32 %v275, %v1410
        %v1413 = vmul.f32 %v277, %v1410
        %v1414 = vmul.f32 %v278, %v1410
        %v1415 = vmul.f32 %v280, %v1410
        %v1416 = vmul.f32 %v281, %v1410
        %v1417 = vmul.f32 %v283, %v1410
        %v1418 = vmul.f32 %v284, %v1410
        %v1419 = vmul.f32 %v286, %v1410
        %v1420 = vmul.f32 %v287, %v1410
        %v1421 = vmul.f32 %v289, %v1410
        %v1422 = vmul.f32 %v290, %v1410
        %v1423 = vmul.f32 %v292, %v1410
        %v1424 = vmul.f32 %v293, %v1410
        %v1425 = vmul.f32 %v295, %v1410
        %v1426 = vmul.f32 %v296, %v1410
        %v1427 = vmul.f32 %v298, %v1410
        %v1428 = vmul.f32 %v299, %v1410
        %v1429 = vmul.f32 %v301, %v1410
        %v1430 = vmul.f32 %v302, %v1410
        %v1431 = vmul.f32 %v304, %v1410
        %v1432 = vmul.f32 %v305, %v1410
        %v1433 = vmul.f32 %v307, %v1410
        %v1434 = vmul.f32 %v308, %v1410
        %v1435 = vmul.f32 %v310, %v1410
        %v1436 = vmul.f32 %v311, %v1410
        %v1437 = vmul.f32 %v313, %v1410
        %v1438 = vmul.f32 %v314, %v1410
        %v1439 = vmul.f32 %v316, %v1410
        %v1440 = vmul.f32 %v317, %v1410
        %v1441 = vmul.f32 %v319, %v1410
        %v1442 = vmul.f32 %v320, %v1410
        %v1443 = vadd.f32 %v1375, %v1411
        %v1444 = vadd.f32 %v1376, %v1412
        %v1445 = vadd.f32 %v1377, %v1413
        %v1446 = vadd.f32 %v1378, %v1414
        %v1447 = vadd.f32 %v1379, %v1415
        %v1448 = vadd.f32 %v1380, %v1416
        %v1449 = vadd.f32 %v1381, %v1417
        %v1450 = vadd.f32 %v1382, %v1418
        %v1451 = vadd.f32 %v1383, %v1419
        %v1452 = vadd.f32 %v1384, %v1420
        %v1453 = vadd.f32 %v1385, %v1421
        %v1454 = vadd.f32 %v1386, %v1422
        %v1455 = vadd.f32 %v1387, %v1423
        %v1456 = vadd.f32 %v1388, %v1424
        %v1457 = vadd.f32 %v1389, %v1425
        %v1458 = vadd.f32 %v1390, %v1426
        %v1459 = vadd.f32 %v1391, %v1427
        %v1460 = vadd.f32 %v1392, %v1428
        %v1461 = vadd.f32 %v1393, %v1429
        %v1462 = vadd.f32 %v1394, %v1430
        %v1463 = vadd.f32 %v1395, %v1431
        %v1464 = vadd.f32 %v1396, %v1432
        %v1465 = vadd.f32 %v1397, %v1433
        %v1466 = vadd.f32 %v1398, %v1434
        %v1467 = vadd.f32 %v1399, %v1435
        %v1468 = vadd.f32 %v1400, %v1436
        %v1469 = vadd.f32 %v1401, %v1437
        %v1470 = vadd.f32 %v1402, %v1438
        %v1471 = vadd.f32 %v1403, %v1439
        %v1472 = vadd.f32 %v1404, %v1440
        %v1473 = vadd.f32 %v1405, %v1441
        %v1474 = vadd.f32 %v1406, %v1442
        %v1475 = vlaneseq
        %v1476 = vshrl.u32 %v1475, 7
        %v1477 = vsub.s32 1, %v1476
        %v1478 = vrot.slane %v324, %v1477
        %v1479 = vmul.f32 %v274, %v1478
        %v1480 = vmul.f32 %v275, %v1478
        %v1481 = vmul.f32 %v276, %v1478
        %v1482 = vmul.f32 %v277, %v1478
        %v1483 = vmul.f32 %v278, %v1478
        %v1484 = vmul.f32 %v279, %v1478
        %v1485 = vmul.f32 %v280, %v1478
        %v1486 = vmul.f32 %v281, %v1478
        %v1487 = vmul.f32 %v282, %v1478
        %v1488 = vmul.f32 %v283, %v1478
        %v1489 = vmul.f32 %v284, %v1478
        %v1490 = vmul.f32 %v285, %v1478
        %v1491 = vmul.f32 %v286, %v1478
        %v1492 = vmul.f32 %v287, %v1478
        %v1493 = vmul.f32 %v288, %v1478
        %v1494 = vmul.f32 %v289, %v1478
        %v1495 = vmul.f32 %v290, %v1478
        %v1496 = vmul.f32 %v291, %v1478
        %v1497 = vmul.f32 %v292, %v1478
        %v1498 = vmul.f32 %v293, %v1478
        %v1499 = vmul.f32 %v294, %v1478
        %v1500 = vmul.f32 %v295, %v1478
        %v1501 = vmul.f32 %v296, %v1478
        %v1502 = vmul.f32 %v297, %v1478
        %v1503 = vmul.f32 %v298, %v1478
        %v1504 = vmul.f32 %v299, %v1478
        %v1505 = vmul.f32 %v300, %v1478
        %v1506 = vmul.f32 %v301, %v1478
        %v1507 = vmul.f32 %v302, %v1478
        %v1508 = vmul.f32 %v303, %v1478
        %v1509 = vmul.f32 %v304, %v1478
        %v1510 = vmul.f32 %v305, %v1478
        %v1511 = vmul.f32 %v306, %v1478
        %v1512 = vmul.f32 %v307, %v1478
        %v1513 = vmul.f32 %v308, %v1478
        %v1514 = vmul.f32 %v309, %v1478
        %v1515 = vmul.f32 %v310, %v1478
        %v1516 = vmul.f32 %v311, %v1478
        %v1517 = vmul.f32 %v312, %v1478
        %v1518 = vmul.f32 %v313, %v1478
        %v1519 = vmul.f32 %v314, %v1478
        %v1520 = vmul.f32 %v315, %v1478
        %v1521 = vmul.f32 %v316, %v1478
        %v1522 = vmul.f32 %v317, %v1478
        %v1523 = vmul.f32 %v318, %v1478
        %v1524 = vmul.f32 %v319, %v1478
        %v1525 = vmul.f32 %v320, %v1478
        %v1526 = vmul.f32 %v321, %v1478
        %v1575 = vrot.slane %v1479, 1
        %v1576 = vrot.slane %v1480, 1
        %v1577 = vsel %vm461, %v1575, %v1576
        %v1578 = vrot.slane %v1481, 1
        %v1579 = vsel %vm461, %v1576, %v1578
        %v1580 = vrot.slane %v1482, 1
        %v1581 = vrot.slane %v1483, 1
        %v1582 = vsel %vm461, %v1580, %v1581
        %v1583 = vrot.slane %v1484, 1
        %v1584 = vsel %vm461, %v1581, %v1583
        %v1585 = vrot.slane %v1485, 1
        %v1586 = vrot.slane %v1486, 1
        %v1587 = vsel %vm461, %v1585, %v1586
        %v1588 = vrot.slane %v1487, 1
        %v1589 = vsel %vm461, %v1586, %v1588
        %v1590 = vrot.slane %v1488, 1
        %v1591 = vrot.slane %v1489, 1
        %v1592 = vsel %vm461, %v1590, %v1591
        %v1593 = vrot.slane %v1490, 1
        %v1594 = vsel %vm461, %v1591, %v1593
        %v1595 = vrot.slane %v1491, 1
        %v1596 = vrot.slane %v1492, 1
        %v1597 = vsel %vm461, %v1595, %v1596
        %v1598 = vrot.slane %v1493, 1
        %v1599 = vsel %vm461, %v1596, %v1598
        %v1600 = vrot.slane %v1494, 1
        %v1601 = vrot.slane %v1495, 1
        %v1602 = vsel %vm461, %v1600, %v1601
        %v1603 = vrot.slane %v1496, 1
        %v1604 = vsel %vm461, %v1601, %v1603
        %v1605 = vrot.slane %v1497, 1
        %v1606 = vrot.slane %v1498, 1
        %v1607 = vsel %vm461, %v1605, %v1606
        %v1608 = vrot.slane %v1499, 1
        %v1609 = vsel %vm461, %v1606, %v1608
        %v1610 = vrot.slane %v1500, 1
        %v1611 = vrot.slane %v1501, 1
        %v1612 = vsel %vm461, %v1610, %v1611
        %v1613 = vrot.slane %v1502, 1
        %v1614 = vsel %vm461, %v1611, %v1613
        %v1615 = vrot.slane %v1503, 1
        %v1616 = vrot.slane %v1504, 1
        %v1617 = vsel %vm461, %v1615, %v1616
        %v1618 = vrot.slane %v1505, 1
        %v1619 = vsel %vm461, %v1616, %v1618
        %v1620 = vrot.slane %v1506, 1
        %v1621 = vrot.slane %v1507, 1
        %v1622 = vsel %vm461, %v1620, %v1621
        %v1623 = vrot.slane %v1508, 1
        %v1624 = vsel %vm461, %v1621, %v1623
        %v1625 = vrot.slane %v1509, 1
        %v1626 = vrot.slane %v1510, 1
        %v1627 = vsel %vm461, %v1625, %v1626
        %v1628 = vrot.slane %v1511, 1
        %v1629 = vsel %vm461, %v1626, %v1628
        %v1630 = vrot.slane %v1512, 1
        %v1631 = vrot.slane %v1513, 1
        %v1632 = vsel %vm461, %v1630, %v1631
        %v1633 = vrot.slane %v1514, 1
        %v1634 = vsel %vm461, %v1631, %v1633
        %v1635 = vrot.slane %v1515, 1
        %v1636 = vrot.slane %v1516, 1
        %v1637 = vsel %vm461, %v1635, %v1636
        %v1638 = vrot.slane %v1517, 1
        %v1639 = vsel %vm461, %v1636, %v1638
        %v1640 = vrot.slane %v1518, 1
        %v1641 = vrot.slane %v1519, 1
        %v1642 = vsel %vm461, %v1640, %v1641
        %v1643 = vrot.slane %v1520, 1
        %v1644 = vsel %vm461, %v1641, %v1643
        %v1645 = vrot.slane %v1521, 1
        %v1646 = vrot.slane %v1522, 1
        %v1647 = vsel %vm461, %v1645, %v1646
        %v1648 = vrot.slane %v1523, 1
        %v1649 = vsel %vm461, %v1646, %v1648
        %v1650 = vrot.slane %v1524, 1
        %v1651 = vrot.slane %v1525, 1
        %v1652 = vsel %vm461, %v1650, %v1651
        %v1653 = vrot.slane %v1526, 1
        %v1654 = vsel %vm461, %v1651, %v1653
        %v1687 = vadd.f32 %v1443, %v1577
        %v1688 = vadd.f32 %v1444, %v1579
        %v1689 = vadd.f32 %v1445, %v1582
        %v1690 = vadd.f32 %v1446, %v1584
        %v1691 = vadd.f32 %v1447, %v1587
        %v1692 = vadd.f32 %v1448, %v1589
        %v1693 = vadd.f32 %v1449, %v1592
        %v1694 = vadd.f32 %v1450, %v1594
        %v1695 = vadd.f32 %v1451, %v1597
        %v1696 = vadd.f32 %v1452, %v1599
        %v1697 = vadd.f32 %v1453, %v1602
        %v1698 = vadd.f32 %v1454, %v1604
        %v1699 = vadd.f32 %v1455, %v1607
        %v1700 = vadd.f32 %v1456, %v1609
        %v1701 = vadd.f32 %v1457, %v1612
        %v1702 = vadd.f32 %v1458, %v1614
        %v1703 = vadd.f32 %v1459, %v1617
        %v1704 = vadd.f32 %v1460, %v1619
        %v1705 = vadd.f32 %v1461, %v1622
        %v1706 = vadd.f32 %v1462, %v1624
        %v1707 = vadd.f32 %v1463, %v1627
        %v1708 = vadd.f32 %v1464, %v1629
        %v1709 = vadd.f32 %v1465, %v1632
        %v1710 = vadd.f32 %v1466, %v1634
        %v1711 = vadd.f32 %v1467, %v1637
        %v1712 = vadd.f32 %v1468, %v1639
        %v1713 = vadd.f32 %v1469, %v1642
        %v1714 = vadd.f32 %v1470, %v1644
        %v1715 = vadd.f32 %v1471, %v1647
        %v1716 = vadd.f32 %v1472, %v1649
        %v1717 = vadd.f32 %v1473, %v1652
        %v1718 = vadd.f32 %v1474, %v1654
        %v1719 = vlaneseq
        %v1720 = vshrl.u32 %v1719, 7
        %v1721 = vsub.s32 2, %v1720
        %v1722 = vrot.slane %v324, %v1721
        %v1723 = vmul.f32 %v274, %v1722
        %v1724 = vmul.f32 %v275, %v1722
        %v1725 = vmul.f32 %v276, %v1722
        %v1726 = vmul.f32 %v277, %v1722
        %v1727 = vmul.f32 %v278, %v1722
        %v1728 = vmul.f32 %v279, %v1722
        %v1729 = vmul.f32 %v280, %v1722
        %v1730 = vmul.f32 %v281, %v1722
        %v1731 = vmul.f32 %v282, %v1722
        %v1732 = vmul.f32 %v283, %v1722
        %v1733 = vmul.f32 %v284, %v1722
        %v1734 = vmul.f32 %v285, %v1722
        %v1735 = vmul.f32 %v286, %v1722
        %v1736 = vmul.f32 %v287, %v1722
        %v1737 = vmul.f32 %v288, %v1722
        %v1738 = vmul.f32 %v289, %v1722
        %v1739 = vmul.f32 %v290, %v1722
        %v1740 = vmul.f32 %v291, %v1722
        %v1741 = vmul.f32 %v292, %v1722
        %v1742 = vmul.f32 %v293, %v1722
        %v1743 = vmul.f32 %v294, %v1722
        %v1744 = vmul.f32 %v295, %v1722
        %v1745 = vmul.f32 %v296, %v1722
        %v1746 = vmul.f32 %v297, %v1722
        %v1747 = vmul.f32 %v298, %v1722
        %v1748 = vmul.f32 %v299, %v1722
        %v1749 = vmul.f32 %v300, %v1722
        %v1750 = vmul.f32 %v301, %v1722
        %v1751 = vmul.f32 %v302, %v1722
        %v1752 = vmul.f32 %v303, %v1722
        %v1753 = vmul.f32 %v304, %v1722
        %v1754 = vmul.f32 %v305, %v1722
        %v1755 = vmul.f32 %v306, %v1722
        %v1756 = vmul.f32 %v307, %v1722
        %v1757 = vmul.f32 %v308, %v1722
        %v1758 = vmul.f32 %v309, %v1722
        %v1759 = vmul.f32 %v310, %v1722
        %v1760 = vmul.f32 %v311, %v1722
        %v1761 = vmul.f32 %v312, %v1722
        %v1762 = vmul.f32 %v313, %v1722
        %v1763 = vmul.f32 %v314, %v1722
        %v1764 = vmul.f32 %v315, %v1722
        %v1765 = vmul.f32 %v316, %v1722
        %v1766 = vmul.f32 %v317, %v1722
        %v1767 = vmul.f32 %v318, %v1722
        %v1768 = vmul.f32 %v319, %v1722
        %v1769 = vmul.f32 %v320, %v1722
        %v1770 = vmul.f32 %v321, %v1722
        %v1819 = vrot.slane %v1723, 2
        %v1820 = vrot.slane %v1724, 2
        %v1821 = vsel %vm706, %v1819, %v1820
        %v1822 = vrot.slane %v1725, 2
        %v1823 = vsel %vm706, %v1820, %v1822
        %v1824 = vrot.slane %v1726, 2
        %v1825 = vrot.slane %v1727, 2
        %v1826 = vsel %vm706, %v1824, %v1825
        %v1827 = vrot.slane %v1728, 2
        %v1828 = vsel %vm706, %v1825, %v1827
        %v1829 = vrot.slane %v1729, 2
        %v1830 = vrot.slane %v1730, 2
        %v1831 = vsel %vm706, %v1829, %v1830
        %v1832 = vrot.slane %v1731, 2
        %v1833 = vsel %vm706, %v1830, %v1832
        %v1834 = vrot.slane %v1732, 2
        %v1835 = vrot.slane %v1733, 2
        %v1836 = vsel %vm706, %v1834, %v1835
        %v1837 = vrot.slane %v1734, 2
        %v1838 = vsel %vm706, %v1835, %v1837
        %v1839 = vrot.slane %v1735, 2
        %v1840 = vrot.slane %v1736, 2
        %v1841 = vsel %vm706, %v1839, %v1840
        %v1842 = vrot.slane %v1737, 2
        %v1843 = vsel %vm706, %v1840, %v1842
        %v1844 = vrot.slane %v1738, 2
        %v1845 = vrot.slane %v1739, 2
        %v1846 = vsel %vm706, %v1844, %v1845
        %v1847 = vrot.slane %v1740, 2
        %v1848 = vsel %vm706, %v1845, %v1847
        %v1849 = vrot.slane %v1741, 2
        %v1850 = vrot.slane %v1742, 2
        %v1851 = vsel %vm706, %v1849, %v1850
        %v1852 = vrot.slane %v1743, 2
        %v1853 = vsel %vm706, %v1850, %v1852
        %v1854 = vrot.slane %v1744, 2
        %v1855 = vrot.slane %v1745, 2
        %v1856 = vsel %vm706, %v1854, %v1855
        %v1857 = vrot.slane %v1746, 2
        %v1858 = vsel %vm706, %v1855, %v1857
        %v1859 = vrot.slane %v1747, 2
        %v1860 = vrot.slane %v1748, 2
        %v1861 = vsel %vm706, %v1859, %v1860
        %v1862 = vrot.slane %v1749, 2
        %v1863 = vsel %vm706, %v1860, %v1862
        %v1864 = vrot.slane %v1750, 2
        %v1865 = vrot.slane %v1751, 2
        %v1866 = vsel %vm706, %v1864, %v1865
        %v1867 = vrot.slane %v1752, 2
        %v1868 = vsel %vm706, %v1865, %v1867
        %v1869 = vrot.slane %v1753, 2
        %v1870 = vrot.slane %v1754, 2
        %v1871 = vsel %vm706, %v1869, %v1870
        %v1872 = vrot.slane %v1755, 2
        %v1873 = vsel %vm706, %v1870, %v1872
        %v1874 = vrot.slane %v1756, 2
        %v1875 = vrot.slane %v1757, 2
        %v1876 = vsel %vm706, %v1874, %v1875
        %v1877 = vrot.slane %v1758, 2
        %v1878 = vsel %vm706, %v1875, %v1877
        %v1879 = vrot.slane %v1759, 2
        %v1880 = vrot.slane %v1760, 2
        %v1881 = vsel %vm706, %v1879, %v1880
        %v1882 = vrot.slane %v1761, 2
        %v1883 = vsel %vm706, %v1880, %v1882
        %v1884 = vrot.slane %v1762, 2
        %v1885 = vrot.slane %v1763, 2
        %v1886 = vsel %vm706, %v1884, %v1885
        %v1887 = vrot.slane %v1764, 2
        %v1888 = vsel %vm706, %v1885, %v1887
        %v1889 = vrot.slane %v1765, 2
        %v1890 = vrot.slane %v1766, 2
        %v1891 = vsel %vm706, %v1889, %v1890
        %v1892 = vrot.slane %v1767, 2
        %v1893 = vsel %vm706, %v1890, %v1892
        %v1894 = vrot.slane %v1768, 2
        %v1895 = vrot.slane %v1769, 2
        %v1896 = vsel %vm706, %v1894, %v1895
        %v1897 = vrot.slane %v1770, 2
        %v1898 = vsel %vm706, %v1895, %v1897
        %v1931 = vadd.f32 %v1687, %v1821
        %v1932 = vadd.f32 %v1688, %v1823
        %v1933 = vadd.f32 %v1689, %v1826
        %v1934 = vadd.f32 %v1690, %v1828
        %v1935 = vadd.f32 %v1691, %v1831
        %v1936 = vadd.f32 %v1692, %v1833
        %v1937 = vadd.f32 %v1693, %v1836
        %v1938 = vadd.f32 %v1694, %v1838
        %v1939 = vadd.f32 %v1695, %v1841
        %v1940 = vadd.f32 %v1696, %v1843
        %v1941 = vadd.f32 %v1697, %v1846
        %v1942 = vadd.f32 %v1698, %v1848
        %v1943 = vadd.f32 %v1699, %v1851
        %v1944 = vadd.f32 %v1700, %v1853
        %v1945 = vadd.f32 %v1701, %v1856
        %v1946 = vadd.f32 %v1702, %v1858
        %v1947 = vadd.f32 %v1703, %v1861
        %v1948 = vadd.f32 %v1704, %v1863
        %v1949 = vadd.f32 %v1705, %v1866
        %v1950 = vadd.f32 %v1706, %v1868
        %v1951 = vadd.f32 %v1707, %v1871
        %v1952 = vadd.f32 %v1708, %v1873
        %v1953 = vadd.f32 %v1709, %v1876
        %v1954 = vadd.f32 %v1710, %v1878
        %v1955 = vadd.f32 %v1711, %v1881
        %v1956 = vadd.f32 %v1712, %v1883
        %v1957 = vadd.f32 %v1713, %v1886
        %v1958 = vadd.f32 %v1714, %v1888
        %v1959 = vadd.f32 %v1715, %v1891
        %v1960 = vadd.f32 %v1716, %v1893
        %v1961 = vadd.f32 %v1717, %v1896
        %v1962 = vadd.f32 %v1718, %v1898
        %v1963 = vld [vmem:[#allocation2] sm:$0xff]
        %v1964 = vld [vmem:[#allocation2 + $0x8] sm:$0xff]
        %v1965 = vld [vmem:[#allocation2 + $0x10] sm:$0xff]
        %v1966 = vld [vmem:[#allocation2 + $0x18] sm:$0xff]
        %v1967 = vld [vmem:[#allocation2 + $0x20] sm:$0xff]
        %v1968 = vld [vmem:[#allocation2 + $0x28] sm:$0xff]
        %v1969 = vld [vmem:[#allocation2 + $0x30] sm:$0xff]
        %v1970 = vld [vmem:[#allocation2 + $0x38] sm:$0xff]
        %v1971 = vld [vmem:[#allocation2 + $0x40] sm:$0xff]
        %v1972 = vld [vmem:[#allocation2 + $0x48] sm:$0xff]
        %v1973 = vld [vmem:[#allocation2 + $0x50] sm:$0xff]
        %v1974 = vld [vmem:[#allocation2 + $0x58] sm:$0xff]
        %v1975 = vld [vmem:[#allocation2 + $0x60] sm:$0xff]
        %v1976 = vld [vmem:[#allocation2 + $0x68] sm:$0xff]
        %v1977 = vld [vmem:[#allocation2 + $0x70] sm:$0xff]
        %v1978 = vld [vmem:[#allocation2 + $0x78] sm:$0xff]
        %v1979 = vld [vmem:[#allocation2 + $0x80] sm:$0xff]
        %v1980 = vld [vmem:[#allocation2 + $0x88] sm:$0xff]
        %v1981 = vld [vmem:[#allocation2 + $0x90] sm:$0xff]
        %v1982 = vld [vmem:[#allocation2 + $0x98] sm:$0xff]
        %v1983 = vld [vmem:[#allocation2 + $0xa0] sm:$0xff]
        %v1984 = vld [vmem:[#allocation2 + $0xa8] sm:$0xff]
        %v1985 = vld [vmem:[#allocation2 + $0xb0] sm:$0xff]
        %v1986 = vld [vmem:[#allocation2 + $0xb8] sm:$0xff]
        %v1987 = vld [vmem:[#allocation2 + $0xc0] sm:$0xff]
        %v1988 = vld [vmem:[#allocation2 + $0xc8] sm:$0xff]
        %v1989 = vld [vmem:[#allocation2 + $0xd0] sm:$0xff]
        %v1990 = vld [vmem:[#allocation2 + $0xd8] sm:$0xff]
        %v1991 = vld [vmem:[#allocation2 + $0xe0] sm:$0xff]
        %v1992 = vld [vmem:[#allocation2 + $0xe8] sm:$0xff]
        %v1993 = vld [vmem:[#allocation2 + $0xf0] sm:$0xff]
        %v1994 = vld [vmem:[#allocation2 + $0xf8] sm:$0xff]
        %v1995 = vld [vmem:[%s229] sm:$0xff]
        %v1996 = vld [vmem:[%s229 + $0x8] sm:$0xff]
        %v1997 = vld [vmem:[%s229 + $0x10] sm:$0xff]
        %v1998 = vld [vmem:[%s229 + $0x18] sm:$0xff]
        %vm1999 = vcmask 261120
        %v2001 = vsel %vm1999, %v1931, 0
        %v2004 = vsel %vm1999, %v1932, 0
        %v2007 = vsel %vm1999, %v1933, 0
        %v2010 = vsel %vm1999, %v1934, 0
        %v2013 = vsel %vm1999, %v1935, 0
        %v2016 = vsel %vm1999, %v1936, 0
        %v2019 = vsel %vm1999, %v1937, 0
        %v2022 = vsel %vm1999, %v1938, 0
        %v2025 = vsel %vm1999, %v1939, 0
        %v2028 = vsel %vm1999, %v1940, 0
        %v2031 = vsel %vm1999, %v1941, 0
        %v2034 = vsel %vm1999, %v1942, 0
        %v2037 = vsel %vm1999, %v1943, 0
        %v2040 = vsel %vm1999, %v1944, 0
        %v2043 = vsel %vm1999, %v1945, 0
        %v2046 = vsel %vm1999, %v1946, 0
        %v2049 = vsel %vm1999, %v1947, 0
        %v2052 = vsel %vm1999, %v1948, 0
        %v2055 = vsel %vm1999, %v1949, 0
        %v2058 = vsel %vm1999, %v1950, 0
        %v2061 = vsel %vm1999, %v1951, 0
        %v2064 = vsel %vm1999, %v1952, 0
        %v2067 = vsel %vm1999, %v1953, 0
        %v2070 = vsel %vm1999, %v1954, 0
        %v2073 = vsel %vm1999, %v1955, 0
        %v2076 = vsel %vm1999, %v1956, 0
        %v2079 = vsel %vm1999, %v1957, 0
        %v2082 = vsel %vm1999, %v1958, 0
        %v2085 = vsel %vm1999, %v1959, 0
        %v2088 = vsel %vm1999, %v1960, 0
        %v2091 = vsel %vm1999, %v1961, 0
        %v2094 = vsel %vm1999, %v1962, 0
        %2096 = vmatprep.subr.mxu0 0.0
        %2097 = vmatpush1.msra.mxu0 %v1995
        %2098 = vmatprep.subr.mxu0 0.0
        %2099 = vmatpush1.msra.mxu0 %v1996
        %2100 = vmatprep.subr.mxu0 0.0
        %2101 = vmatpush1.msra.mxu0 %v1997
        %2102 = vmatprep.subr.mxu0 0.0
        %2103 = vmatpush1.msra.mxu0 %v1998
        %2104 = vmatprep.subr.mxu0 0.0
        %2105 = vmatpush1.msra.mxu0 0.0
        %2106 = vmatprep.subr.mxu0 0.0
        %2107 = vmatpush1.msra.mxu0 0.0
        %2108 = vmatprep.subr.mxu0 0.0
        %2109 = vmatpush1.msra.mxu0 0.0
        %2110 = vmatprep.subr.mxu0 0.0
        %2111 = vmatpush1.msra.mxu0 0.0
        %2112 = vmatprep.subr.mxu0 0.0
        %2113 = vmatpush1.msra.mxu0 0.0
        %2114 = vmatprep.subr.mxu0 0.0
        %2115 = vmatpush1.msra.mxu0 0.0
        %2116 = vmatprep.subr.mxu0 0.0
        %2117 = vmatpush1.msra.mxu0 0.0
        %2118 = vmatprep.subr.mxu0 0.0
        %2119 = vmatpush1.msra.mxu0 0.0
        %2120 = vmatprep.subr.mxu0 0.0
        %2121 = vmatpush1.msra.mxu0 0.0
        %2122 = vmatprep.subr.mxu0 0.0
        %2123 = vmatpush1.msra.mxu0 0.0
        %2124 = vmatprep.subr.mxu0 0.0
        %2125 = vmatpush1.msra.mxu0 0.0
        %2126 = vmatprep.subr.mxu0 0.0
        %2127 = vmatpush1.msra.mxu0 0.0
        %2128 = vmatprep.subr.mxu0 0.0
        %2129 = vmatpush1.msra.mxu0 0.0
        %2130 = vmatprep.subr.mxu0 0.0
        %2131 = vmatpush1.msra.mxu0 0.0
        %2132 = vmatprep.subr.mxu0 0.0
        %2133 = vmatpush1.msra.mxu0 0.0
        %2134 = vmatprep.subr.mxu0 0.0
        %2135 = vmatpush1.msra.mxu0 0.0
        %2136 = vmatprep.subr.mxu0 0.0
        %2137 = vmatpush1.msra.mxu0 0.0
        %2138 = vmatprep.subr.mxu0 0.0
        %2139 = vmatpush1.msra.mxu0 0.0
        %2140 = vmatprep.subr.mxu0 0.0
        %2141 = vmatpush1.msra.mxu0 0.0
        %2142 = vmatprep.subr.mxu0 0.0
        %2143 = vmatpush1.msra.mxu0 0.0
        %2144 = vmatprep.subr.mxu0 0.0
        %2145 = vmatpush1.msra.mxu0 0.0
        %2146 = vmatprep.subr.mxu0 0.0
        %2147 = vmatpush1.msra.mxu0 0.0
        %2148 = vmatprep.subr.mxu0 0.0
        %2149 = vmatpush1.msra.mxu0 0.0
        %2150 = vmatprep.subr.mxu0 0.0
        %2151 = vmatpush1.msra.mxu0 0.0
        %2152 = vmatprep.subr.mxu0 0.0
        %2153 = vmatpush1.msra.mxu0 0.0
        %2154 = vmatprep.subr.mxu0 0.0
        %2155 = vmatpush1.msra.mxu0 0.0
        %2156 = vmatprep.subr.mxu0 0.0
        %2157 = vmatpush1.msra.mxu0 0.0
        %2158 = vmatprep.subr.mxu0 0.0
        %2159 = vmatpush1.msra.mxu0 0.0
        %2160 = vmatprep.mubr.f32.mxu0 0.0
        %2161 = vmatmul.mubr.f32.gmra.mrb[0].mxu0 %v2001
        %v2162 = vpop.f32.mrb[0].mxu0
        %v2163 = vadd.f32 0.0, %v2162
        %v2164 = vpop.f32.mrb[0].mxu0
        %2165 = vmatprep.mubr.f32.mxu0 0.0
        %2166 = vmatmul.mubr.f32.gmra.mrb[0].mxu0 %v2004
        %v2167 = vpop.f32.mrb[0].mxu0
        %v2168 = vadd.f32 0.0, %v2167
        %v2169 = vpop.f32.mrb[0].mxu0
        %2170 = vmatprep.mubr.f32.mxu0 0.0
        %2171 = vmatmul.mubr.f32.gmra.mrb[0].mxu0 %v2007
        %v2172 = vpop.f32.mrb[0].mxu0
        %v2173 = vadd.f32 0.0, %v2172
        %v2174 = vpop.f32.mrb[0].mxu0
        %2175 = vmatprep.mubr.f32.mxu0 0.0
        %2176 = vmatmul.mubr.f32.gmra.mrb[0].mxu0 %v2010
        %v2177 = vpop.f32.mrb[0].mxu0
        %v2178 = vadd.f32 0.0, %v2177
        %v2179 = vpop.f32.mrb[0].mxu0
        %2180 = vmatprep.mubr.f32.mxu0 0.0
        %2181 = vmatmul.mubr.f32.gmra.mrb[0].mxu0 %v2013
        %v2182 = vpop.f32.mrb[0].mxu0
        %v2183 = vadd.f32 0.0, %v2182
        %v2184 = vpop.f32.mrb[0].mxu0
        %2185 = vmatprep.mubr.f32.mxu0 0.0
        %2186 = vmatmul.mubr.f32.gmra.mrb[0].mxu0 %v2016
        %v2187 = vpop.f32.mrb[0].mxu0
        %v2188 = vadd.f32 0.0, %v2187
        %v2189 = vpop.f32.mrb[0].mxu0
        %2190 = vmatprep.mubr.f32.mxu0 0.0
        %2191 = vmatmul.mubr.f32.gmra.mrb[0].mxu0 %v2019
        %v2192 = vpop.f32.mrb[0].mxu0
        %v2193 = vadd.f32 0.0, %v2192
        %v2194 = vpop.f32.mrb[0].mxu0
        %2195 = vmatprep.mubr.f32.mxu0 0.0
        %2196 = vmatmul.mubr.f32.gmra.mrb[0].mxu0 %v2022
        %v2197 = vpop.f32.mrb[0].mxu0
        %v2198 = vadd.f32 0.0, %v2197
        %v2199 = vpop.f32.mrb[0].mxu0
        %2200 = vmatprep.mubr.f32.mxu0 0.0
        %2201 = vmatmul.mubr.f32.gmra.mrb[0].mxu0 %v2025
        %v2202 = vpop.f32.mrb[0].mxu0
        %v2203 = vadd.f32 0.0, %v2202
        %v2204 = vpop.f32.mrb[0].mxu0
        %2205 = vmatprep.mubr.f32.mxu0 0.0
        %2206 = vmatmul.mubr.f32.gmra.mrb[0].mxu0 %v2028
        %v2207 = vpop.f32.mrb[0].mxu0
        %v2208 = vadd.f32 0.0, %v2207
        %v2209 = vpop.f32.mrb[0].mxu0
        %2210 = vmatprep.mubr.f32.mxu0 0.0
        %2211 = vmatmul.mubr.f32.gmra.mrb[0].mxu0 %v2031
        %v2212 = vpop.f32.mrb[0].mxu0
        %v2213 = vadd.f32 0.0, %v2212
        %v2214 = vpop.f32.mrb[0].mxu0
        %2215 = vmatprep.mubr.f32.mxu0 0.0
        %2216 = vmatmul.mubr.f32.gmra.mrb[0].mxu0 %v2034
        %v2217 = vpop.f32.mrb[0].mxu0
        %v2218 = vadd.f32 0.0, %v2217
        %v2219 = vpop.f32.mrb[0].mxu0
        %2220 = vmatprep.mubr.f32.mxu0 0.0
        %2221 = vmatmul.mubr.f32.gmra.mrb[0].mxu0 %v2037
        %v2222 = vpop.f32.mrb[0].mxu0
        %v2223 = vadd.f32 0.0, %v2222
        %v2224 = vpop.f32.mrb[0].mxu0
        %2225 = vmatprep.mubr.f32.mxu0 0.0
        %2226 = vmatmul.mubr.f32.gmra.mrb[0].mxu0 %v2040
        %v2227 = vpop.f32.mrb[0].mxu0
        %v2228 = vadd.f32 0.0, %v2227
        %v2229 = vpop.f32.mrb[0].mxu0
        %2230 = vmatprep.mubr.f32.mxu0 0.0
        %2231 = vmatmul.mubr.f32.gmra.mrb[0].mxu0 %v2043
        %v2232 = vpop.f32.mrb[0].mxu0
        %v2233 = vadd.f32 0.0, %v2232
        %v2234 = vpop.f32.mrb[0].mxu0
        %2235 = vmatprep.mubr.f32.mxu0 0.0
        %2236 = vmatmul.mubr.f32.gmra.mrb[0].mxu0 %v2046
        %v2237 = vpop.f32.mrb[0].mxu0
        %v2238 = vadd.f32 0.0, %v2237
        %v2239 = vpop.f32.mrb[0].mxu0
        %2240 = vmatprep.mubr.f32.mxu0 0.0
        %2241 = vmatmul.mubr.f32.gmra.mrb[0].mxu0 %v2049
        %v2242 = vpop.f32.mrb[0].mxu0
        %v2243 = vadd.f32 0.0, %v2242
        %v2244 = vpop.f32.mrb[0].mxu0
        %2245 = vmatprep.mubr.f32.mxu0 0.0
        %2246 = vmatmul.mubr.f32.gmra.mrb[0].mxu0 %v2052
        %v2247 = vpop.f32.mrb[0].mxu0
        %v2248 = vadd.f32 0.0, %v2247
        %v2249 = vpop.f32.mrb[0].mxu0
        %2250 = vmatprep.mubr.f32.mxu0 0.0
        %2251 = vmatmul.mubr.f32.gmra.mrb[0].mxu0 %v2055
        %v2252 = vpop.f32.mrb[0].mxu0
        %v2253 = vadd.f32 0.0, %v2252
        %v2254 = vpop.f32.mrb[0].mxu0
        %2255 = vmatprep.mubr.f32.mxu0 0.0
        %2256 = vmatmul.mubr.f32.gmra.mrb[0].mxu0 %v2058
        %v2257 = vpop.f32.mrb[0].mxu0
        %v2258 = vadd.f32 0.0, %v2257
        %v2259 = vpop.f32.mrb[0].mxu0
        %2260 = vmatprep.mubr.f32.mxu0 0.0
        %2261 = vmatmul.mubr.f32.gmra.mrb[0].mxu0 %v2061
        %v2262 = vpop.f32.mrb[0].mxu0
        %v2263 = vadd.f32 0.0, %v2262
        %v2264 = vpop.f32.mrb[0].mxu0
        %2265 = vmatprep.mubr.f32.mxu0 0.0
        %2266 = vmatmul.mubr.f32.gmra.mrb[0].mxu0 %v2064
        %v2267 = vpop.f32.mrb[0].mxu0
        %v2268 = vadd.f32 0.0, %v2267
        %v2269 = vpop.f32.mrb[0].mxu0
        %2270 = vmatprep.mubr.f32.mxu0 0.0
        %2271 = vmatmul.mubr.f32.gmra.mrb[0].mxu0 %v2067
        %v2272 = vpop.f32.mrb[0].mxu0
        %v2273 = vadd.f32 0.0, %v2272
        %v2274 = vpop.f32.mrb[0].mxu0
        %2275 = vmatprep.mubr.f32.mxu0 0.0
        %2276 = vmatmul.mubr.f32.gmra.mrb[0].mxu0 %v2070
        %v2277 = vpop.f32.mrb[0].mxu0
        %v2278 = vadd.f32 0.0, %v2277
        %v2279 = vpop.f32.mrb[0].mxu0
        %2280 = vmatprep.mubr.f32.mxu0 0.0
        %2281 = vmatmul.mubr.f32.gmra.mrb[0].mxu0 %v2073
        %v2282 = vpop.f32.mrb[0].mxu0
        %v2283 = vadd.f32 0.0, %v2282
        %v2284 = vpop.f32.mrb[0].mxu0
        %2285 = vmatprep.mubr.f32.mxu0 0.0
        %2286 = vmatmul.mubr.f32.gmra.mrb[0].mxu0 %v2076
        %v2287 = vpop.f32.mrb[0].mxu0
        %v2288 = vadd.f32 0.0, %v2287
        %v2289 = vpop.f32.mrb[0].mxu0
        %2290 = vmatprep.mubr.f32.mxu0 0.0
        %2291 = vmatmul.mubr.f32.gmra.mrb[0].mxu0 %v2079
        %v2292 = vpop.f32.mrb[0].mxu0
        %v2293 = vadd.f32 0.0, %v2292
        %v2294 = vpop.f32.mrb[0].mxu0
        %2295 = vmatprep.mubr.f32.mxu0 0.0
        %2296 = vmatmul.mubr.f32.gmra.mrb[0].mxu0 %v2082
        %v2297 = vpop.f32.mrb[0].mxu0
        %v2298 = vadd.f32 0.0, %v2297
        %v2299 = vpop.f32.mrb[0].mxu0
        %2300 = vmatprep.mubr.f32.mxu0 0.0
        %2301 = vmatmul.mubr.f32.gmra.mrb[0].mxu0 %v2085
        %v2302 = vpop.f32.mrb[0].mxu0
        %v2303 = vadd.f32 0.0, %v2302
        %v2304 = vpop.f32.mrb[0].mxu0
        %2305 = vmatprep.mubr.f32.mxu0 0.0
        %2306 = vmatmul.mubr.f32.gmra.mrb[0].mxu0 %v2088
        %v2307 = vpop.f32.mrb[0].mxu0
        %v2308 = vadd.f32 0.0, %v2307
        %v2309 = vpop.f32.mrb[0].mxu0
        %2310 = vmatprep.mubr.f32.mxu0 0.0
        %2311 = vmatmul.mubr.f32.gmra.mrb[0].mxu0 %v2091
        %v2312 = vpop.f32.mrb[0].mxu0
        %v2313 = vadd.f32 0.0, %v2312
        %v2314 = vpop.f32.mrb[0].mxu0
        %2315 = vmatprep.mubr.f32.mxu0 0.0
        %2316 = vmatmul.mubr.f32.gmra.mrb[0].mxu0 %v2094
        %v2317 = vpop.f32.mrb[0].mxu0
        %v2318 = vadd.f32 0.0, %v2317
        %v2319 = vpop.f32.mrb[0].mxu0
        %2320 = vdwg.mxu0
        %v2321 = vadd.f32 %v1963, %v2163
        %v2322 = vadd.f32 %v1964, %v2168
        %v2323 = vadd.f32 %v1965, %v2173
        %v2324 = vadd.f32 %v1966, %v2178
        %v2325 = vadd.f32 %v1967, %v2183
        %v2326 = vadd.f32 %v1968, %v2188
        %v2327 = vadd.f32 %v1969, %v2193
        %v2328 = vadd.f32 %v1970, %v2198
        %v2329 = vadd.f32 %v1971, %v2203
        %v2330 = vadd.f32 %v1972, %v2208
        %v2331 = vadd.f32 %v1973, %v2213
        %v2332 = vadd.f32 %v1974, %v2218
        %v2333 = vadd.f32 %v1975, %v2223
        %v2334 = vadd.f32 %v1976, %v2228
        %v2335 = vadd.f32 %v1977, %v2233
        %v2336 = vadd.f32 %v1978, %v2238
        %v2337 = vadd.f32 %v1979, %v2243
        %v2338 = vadd.f32 %v1980, %v2248
        %v2339 = vadd.f32 %v1981, %v2253
        %v2340 = vadd.f32 %v1982, %v2258
        %v2341 = vadd.f32 %v1983, %v2263
        %v2342 = vadd.f32 %v1984, %v2268
        %v2343 = vadd.f32 %v1985, %v2273
        %v2344 = vadd.f32 %v1986, %v2278
        %v2345 = vadd.f32 %v1987, %v2283
        %v2346 = vadd.f32 %v1988, %v2288
        %v2347 = vadd.f32 %v1989, %v2293
        %v2348 = vadd.f32 %v1990, %v2298
        %v2349 = vadd.f32 %v1991, %v2303
        %v2350 = vadd.f32 %v1992, %v2308
        %v2351 = vadd.f32 %v1993, %v2313
        %v2352 = vadd.f32 %v1994, %v2318
        %vm2353 = vcmask 523264
        %2354 = vst.msk [vmem:[#allocation2] sm:$0xff] %vm2353, %v2321
        %2355 = vst.msk [vmem:[#allocation2 + $0x8] sm:$0xff] %vm2353, %v2322
        %2356 = vst.msk [vmem:[#allocation2 + $0x10] sm:$0xff] %vm2353, %v2323
        %2357 = vst.msk [vmem:[#allocation2 + $0x18] sm:$0xff] %vm2353, %v2324
        %2358 = vst.msk [vmem:[#allocation2 + $0x20] sm:$0xff] %vm2353, %v2325
        %2359 = vst.msk [vmem:[#allocation2 + $0x28] sm:$0xff] %vm2353, %v2326
        %2360 = vst.msk [vmem:[#allocation2 + $0x30] sm:$0xff] %vm2353, %v2327
        %2361 = vst.msk [vmem:[#allocation2 + $0x38] sm:$0xff] %vm2353, %v2328
        %2362 = vst.msk [vmem:[#allocation2 + $0x40] sm:$0xff] %vm2353, %v2329
        %2363 = vst.msk [vmem:[#allocation2 + $0x48] sm:$0xff] %vm2353, %v2330
        %2364 = vst.msk [vmem:[#allocation2 + $0x50] sm:$0xff] %vm2353, %v2331
        %2365 = vst.msk [vmem:[#allocation2 + $0x58] sm:$0xff] %vm2353, %v2332
        %2366 = vst.msk [vmem:[#allocation2 + $0x60] sm:$0xff] %vm2353, %v2333
        %2367 = vst.msk [vmem:[#allocation2 + $0x68] sm:$0xff] %vm2353, %v2334
        %2368 = vst.msk [vmem:[#allocation2 + $0x70] sm:$0xff] %vm2353, %v2335
        %2369 = vst.msk [vmem:[#allocation2 + $0x78] sm:$0xff] %vm2353, %v2336
        %2370 = vst.msk [vmem:[#allocation2 + $0x80] sm:$0xff] %vm2353, %v2337
        %2371 = vst.msk [vmem:[#allocation2 + $0x88] sm:$0xff] %vm2353, %v2338
        %2372 = vst.msk [vmem:[#allocation2 + $0x90] sm:$0xff] %vm2353, %v2339
        %2373 = vst.msk [vmem:[#allocation2 + $0x98] sm:$0xff] %vm2353, %v2340
        %2374 = vst.msk [vmem:[#allocation2 + $0xa0] sm:$0xff] %vm2353, %v2341
        %2375 = vst.msk [vmem:[#allocation2 + $0xa8] sm:$0xff] %vm2353, %v2342
        %2376 = vst.msk [vmem:[#allocation2 + $0xb0] sm:$0xff] %vm2353, %v2343
        %2377 = vst.msk [vmem:[#allocation2 + $0xb8] sm:$0xff] %vm2353, %v2344
        %2378 = vst.msk [vmem:[#allocation2 + $0xc0] sm:$0xff] %vm2353, %v2345
        %2379 = vst.msk [vmem:[#allocation2 + $0xc8] sm:$0xff] %vm2353, %v2346
        %2380 = vst.msk [vmem:[#allocation2 + $0xd0] sm:$0xff] %vm2353, %v2347
        %2381 = vst.msk [vmem:[#allocation2 + $0xd8] sm:$0xff] %vm2353, %v2348
        %2382 = vst.msk [vmem:[#allocation2 + $0xe0] sm:$0xff] %vm2353, %v2349
        %2383 = vst.msk [vmem:[#allocation2 + $0xe8] sm:$0xff] %vm2353, %v2350
        %2384 = vst.msk [vmem:[#allocation2 + $0xf0] sm:$0xff] %vm2353, %v2351
        %2385 = vst.msk [vmem:[#allocation2 + $0xf8] sm:$0xff] %vm2353, %v2352
        // Predicated region
        $region37: #{tpu_custom_call.1} parent=31 // pred_check
          %p2386 = pneg %p231
        $region38: #{tpu_custom_call.1} parent=31 // pred_check_branch
          %2388 = sbr.rel (%p2386) target = $region40
        $region39: #{tpu_custom_call.1} parent=31 // pred_region
          %v2389 = vld [vmem:[#allocation2] sm:$0xff]
          %v2390 = vld [vmem:[#allocation2 + $0x8] sm:$0xff]
          %v2391 = vld [vmem:[#allocation2 + $0x10] sm:$0xff]
          %v2392 = vld [vmem:[#allocation2 + $0x18] sm:$0xff]
          %v2393 = vld [vmem:[#allocation2 + $0x20] sm:$0xff]
          %v2394 = vld [vmem:[#allocation2 + $0x28] sm:$0xff]
          %v2395 = vld [vmem:[#allocation2 + $0x30] sm:$0xff]
          %v2396 = vld [vmem:[#allocation2 + $0x38] sm:$0xff]
          %v2397 = vld [vmem:[#allocation2 + $0x40] sm:$0xff]
          %v2398 = vld [vmem:[#allocation2 + $0x48] sm:$0xff]
          %v2399 = vld [vmem:[#allocation2 + $0x50] sm:$0xff]
          %v2400 = vld [vmem:[#allocation2 + $0x58] sm:$0xff]
          %v2401 = vld [vmem:[#allocation2 + $0x60] sm:$0xff]
          %v2402 = vld [vmem:[#allocation2 + $0x68] sm:$0xff]
          %v2403 = vld [vmem:[#allocation2 + $0x70] sm:$0xff]
          %v2404 = vld [vmem:[#allocation2 + $0x78] sm:$0xff]
          %v2405 = vld [vmem:[#allocation2 + $0x80] sm:$0xff]
          %v2406 = vld [vmem:[#allocation2 + $0x88] sm:$0xff]
          %v2407 = vld [vmem:[#allocation2 + $0x90] sm:$0xff]
          %v2408 = vld [vmem:[#allocation2 + $0x98] sm:$0xff]
          %v2409 = vld [vmem:[#allocation2 + $0xa0] sm:$0xff]
          %v2410 = vld [vmem:[#allocation2 + $0xa8] sm:$0xff]
          %v2411 = vld [vmem:[#allocation2 + $0xb0] sm:$0xff]
          %v2412 = vld [vmem:[#allocation2 + $0xb8] sm:$0xff]
          %v2413 = vld [vmem:[#allocation2 + $0xc0] sm:$0xff]
          %v2414 = vld [vmem:[#allocation2 + $0xc8] sm:$0xff]
          %v2415 = vld [vmem:[#allocation2 + $0xd0] sm:$0xff]
          %v2416 = vld [vmem:[#allocation2 + $0xd8] sm:$0xff]
          %v2417 = vld [vmem:[#allocation2 + $0xe0] sm:$0xff]
          %v2418 = vld [vmem:[#allocation2 + $0xe8] sm:$0xff]
          %v2419 = vld [vmem:[#allocation2 + $0xf0] sm:$0xff]
          %v2420 = vld [vmem:[#allocation2 + $0xf8] sm:$0xff]
          %2421 = vst.msk [vmem:[%s212] sm:$0xff] %vm2353, %v2389
          %2422 = vst.msk [vmem:[%s212 + $0x8] sm:$0xff] %vm2353, %v2390
          %2423 = vst.msk [vmem:[%s212 + $0x10] sm:$0xff] %vm2353, %v2391
          %2424 = vst.msk [vmem:[%s212 + $0x18] sm:$0xff] %vm2353, %v2392
          %2425 = vst.msk [vmem:[%s212 + $0x20] sm:$0xff] %vm2353, %v2393
          %2426 = vst.msk [vmem:[%s212 + $0x28] sm:$0xff] %vm2353, %v2394
          %2427 = vst.msk [vmem:[%s212 + $0x30] sm:$0xff] %vm2353, %v2395
          %2428 = vst.msk [vmem:[%s212 + $0x38] sm:$0xff] %vm2353, %v2396
          %2429 = vst.msk [vmem:[%s212 + $0x40] sm:$0xff] %vm2353, %v2397
          %2430 = vst.msk [vmem:[%s212 + $0x48] sm:$0xff] %vm2353, %v2398
          %2431 = vst.msk [vmem:[%s212 + $0x50] sm:$0xff] %vm2353, %v2399
          %2432 = vst.msk [vmem:[%s212 + $0x58] sm:$0xff] %vm2353, %v2400
          %2433 = vst.msk [vmem:[%s212 + $0x60] sm:$0xff] %vm2353, %v2401
          %2434 = vst.msk [vmem:[%s212 + $0x68] sm:$0xff] %vm2353, %v2402
          %2435 = vst.msk [vmem:[%s212 + $0x70] sm:$0xff] %vm2353, %v2403
          %2436 = vst.msk [vmem:[%s212 + $0x78] sm:$0xff] %vm2353, %v2404
          %2437 = vst.msk [vmem:[%s212 + $0x80] sm:$0xff] %vm2353, %v2405
          %2438 = vst.msk [vmem:[%s212 + $0x88] sm:$0xff] %vm2353, %v2406
          %2439 = vst.msk [vmem:[%s212 + $0x90] sm:$0xff] %vm2353, %v2407
          %2440 = vst.msk [vmem:[%s212 + $0x98] sm:$0xff] %vm2353, %v2408
          %2441 = vst.msk [vmem:[%s212 + $0xa0] sm:$0xff] %vm2353, %v2409
          %2442 = vst.msk [vmem:[%s212 + $0xa8] sm:$0xff] %vm2353, %v2410
          %2443 = vst.msk [vmem:[%s212 + $0xb0] sm:$0xff] %vm2353, %v2411
          %2444 = vst.msk [vmem:[%s212 + $0xb8] sm:$0xff] %vm2353, %v2412
          %2445 = vst.msk [vmem:[%s212 + $0xc0] sm:$0xff] %vm2353, %v2413
          %2446 = vst.msk [vmem:[%s212 + $0xc8] sm:$0xff] %vm2353, %v2414
          %2447 = vst.msk [vmem:[%s212 + $0xd0] sm:$0xff] %vm2353, %v2415
          %2448 = vst.msk [vmem:[%s212 + $0xd8] sm:$0xff] %vm2353, %v2416
          %2449 = vst.msk [vmem:[%s212 + $0xe0] sm:$0xff] %vm2353, %v2417
          %2450 = vst.msk [vmem:[%s212 + $0xe8] sm:$0xff] %vm2353, %v2418
          %2451 = vst.msk [vmem:[%s212 + $0xf0] sm:$0xff] %vm2353, %v2419
          %2452 = vst.msk [vmem:[%s212 + $0xf8] sm:$0xff] %vm2353, %v2420
        $region40: #{tpu_custom_call.1} parent=31 // pred_fallthru
          _
        %s2453 = sand.u32 %s117, 1
        %s2454 = scalar_lea.sflag [#allocation4], %s2453
        %s2455 = sand.u32 %s117, 1
        %s2456 = smul.addr %s2455, 256
        %s2457 = scalar_lea.vmem [#allocation3], %s2456
        // Predicated region
        $region41: #{tpu_custom_call.1} parent=31 // pred_check
          %p2458 = pneg %p127
        $region42: #{tpu_custom_call.1} parent=31 // pred_check_branch
          %2460 = sbr.rel (%p2458) target = $region44
        $region43: #{tpu_custom_call.1} parent=31 // pred_region
          %s2462 = ssub.s32 4096, 4096
          %2463 = vsyncadd %s2454, %s2462
          %s2464 = smul.addr %s21, 32
          %s2465 = smul.addr %s2464, 128
          %s2466 = scalar_lea.hbm %s3, %s2465
          %s2467 = sshll.u32 %s2457, 4
          %s2468 = int_to_ptr.vmem [resolvable:$true] %s2467
          %2473 = dma.vmem_to_hbm [thread:$0]  %s2468, 4096, %s2466, %s2454, 128, 128, 8
        $region44: #{tpu_custom_call.1} parent=31 // pred_fallthru
          _
      $region32: #{tpu_custom_call.1} parent=5 // pred_fallthru
        _
      %p2474 = scmp.le.s32.totalorder 2, %s12
      // Predicated region
      $region45: #{tpu_custom_call.1} parent=5 // pred_check
        %p2475 = pneg %p2474
      $region46: #{tpu_custom_call.1} parent=5 // pred_check_branch
        %2477 = sbr.rel (%p2475) target = $region48
      $region47: #{tpu_custom_call.1} parent=5 // pred_region
        %s2478 = ssub.s32 %s12, 2
        // Predicated region
        $region49: #{tpu_custom_call.1} parent=47 // pred_check
          %p2479 = pneg %p133
        $region50: #{tpu_custom_call.1} parent=47 // pred_check_branch
          %2481 = sbr.rel (%p2479) target = $region52
        $region51: #{tpu_custom_call.1} parent=47 // pred_region
          %s2482 = sand.u32 %s118, 1
          %s2483 = scalar_lea.sflag [#allocation4], %s2482
          %s2484 = sand.u32 %s118, 1
          %s2485 = smul.addr %s2484, 256
          %s2486 = scalar_lea.vmem [#allocation3], %s2485
          %2487 = dma.done %s2483, 4096
        $region52: #{tpu_custom_call.1} parent=47 // pred_fallthru
          _
      $region48: #{tpu_custom_call.1} parent=5 // pred_fallthru
        _
    $region6: #{tpu_custom_call.1} parent=1 // loop_footer
      %s16 = sadd.s32 1, %s12
    $region7: #{tpu_custom_call.1} parent=1 // loop_footer_branch
      %11 = sbr.rel target = $region3
    $region8: #{tpu_custom_call.1} parent=1 // loop_exit
      _
    %2488 = vsyncpa [#allocation4], 1
    %s2489 = scalar_lea.sflag [#allocation4], 1
    %2490 = vsyncpa %s2489, 1

</llo_original>
